<compile_context>
chip_gen: v7x
topology: tpu7x:2x2x1
jax: 0.10.0
libtpu: 0.0.40
codegen_flags: <defaults>
</compile_context>

<pallas_src>
import math

import jax
import jax.numpy as jnp
from jax import lax
from jax.experimental import pallas as pl
from jax.experimental.pallas import tpu as pltpu

LN_EPS = 1e-5


def _patch_merging_kernel(x_ref, gamma_ref, beta_ref, w_ref, o_ref):
    """One (batch, output-row-block) tile.

    x_ref     : (1, M, 4C) bf16, lane = kh*2C + kw*C + c (im2col per output pixel)
    gamma_ref : (1, C)  f32  LayerNorm gamma
    beta_ref  : (1, C)  f32  LayerNorm beta
    w_ref     : (4, C, 2C) bf16, tap q = kh*2 + kw, rows = c_in, cols = c_out
    o_ref     : (1, 2C, M) output block, channel-major (NCHW) storage
    """
    m = x_ref.shape[1]
    c = gamma_ref.shape[1]
    c_out = w_ref.shape[2]

    x = x_ref[0].astype(jnp.float32)                 # (M, 4C), single upcast
    gamma = gamma_ref[...]                           # (1, C)
    beta = beta_ref[...]                             # (1, C)

    acc = jnp.zeros((m, c_out), jnp.float32)
    for q in range(4):                               # (kh, kw) taps, unrolled at trace time
        xq = x[:, q * c:(q + 1) * c]                 # (M, C) static lane slice
        mu = jnp.mean(xq, axis=-1, keepdims=True)
        xc = xq - mu
        var = jnp.mean(xc * xc, axis=-1, keepdims=True)
        xn = xc * lax.rsqrt(var + LN_EPS) * gamma + beta
        acc = acc + jnp.dot(xn.astype(w_ref.dtype), w_ref[q],
                            preferred_element_type=jnp.float32)

    # Store channel-major so the final result is NCHW without a separate HBM
    # transpose pass; the store's lane dim is M (>= 128 at realistic tiles).
    o_ref[0] = acc.T.astype(o_ref.dtype)


def _pick_row_tile(B, Ho, Wo, C, in_elt, out_elt,
                   pipe_budget=8 << 20, pipe_budget_max=14 << 20):
    """Largest output-row tile th (a divisor of Ho) such that the
    double-buffered input+output pipeline fits `pipe_budget` and the output
    block's minor dim (th*Wo) keeps lane-dense stores."""
    def pipe_bytes(th):
        m = th * Wo
        return 2 * (m * 4 * C * in_elt + m * 2 * C * out_elt)

    divisors = [d for d in range(1, Ho + 1) if Ho % d == 0]
    aligned = lambda d: (d * Wo) % 128 == 0 or d == Ho
    min_blocks = max(1, -(-4 // B))   # aim for >= ~4 total grid steps (v7x megacore)

    cands = [d for d in divisors
             if aligned(d) and pipe_bytes(d) <= pipe_budget and Ho // d >= min_blocks]
    if not cands:                      # drop the step-count preference
        cands = [d for d in divisors if aligned(d) and pipe_bytes(d) <= pipe_budget]
    if not cands and pipe_bytes(Ho) <= pipe_budget_max:
        cands = [Ho]                   # whole image per step (always lane-aligned)
    if not cands:                      # last resort: may store with <128-lane tiles
        cands = [d for d in divisors if pipe_bytes(d) <= pipe_budget] or [1]
    return max(cands)


def patch_merging(x_nchw, params):
    """PatchMerging_s.forward: (B, C, H, W) -> (B, 2C, H//2, W//2)."""
    B, C, H, W = x_nchw.shape
    assert H % 2 == 0 and W % 2 == 0, "spatial dims must be even for 2x2/s2 reduction"
    Ho, Wo = H // 2, W // 2
    out_dtype = x_nchw.dtype

    # ONE fused XLA pass (transpose + bf16 convert): NCHW -> im2col-along-lanes
    # (B, Ho*Wo, 4C) with lane = kh*2C + kw*C + c. The trailing reshapes are free.
    x = x_nchw.reshape(B, C, Ho, 2, Wo, 2)
    x = jnp.transpose(x, (0, 2, 4, 3, 5, 1))         # (B, Ho, Wo, kh, kw, C)
    x = x.reshape(B, Ho * Wo, 4 * C).astype(jnp.bfloat16)

    th = _pick_row_tile(B, Ho, Wo, C, in_elt=2, out_elt=out_dtype.itemsize)
    M = th * Wo
    grid = (B, Ho // th)

    # VMEM budget: double-buffered pipeline + in-kernel f32 temporaries.
    in_blk = M * 4 * C * 2
    out_blk = M * 2 * C * out_dtype.itemsize
    vmem_est = 2 * (in_blk + out_blk) + 5 * in_blk + 2 * out_blk
    compiler_kwargs = dict(dimension_semantics=("parallel", "parallel"))
    if vmem_est > 14 << 20:            # raise the scoped-VMEM limit only when needed
        compiler_kwargs["vmem_limit_bytes"] = int(min(48 << 20, max(32 << 20, vmem_est)))

    out = pl.pallas_call(
        _patch_merging_kernel,
        out_shape=jax.ShapeDtypeStruct((B, 2 * C, Ho * Wo), out_dtype),
        grid=grid,
        in_specs=[
            pl.BlockSpec((1, M, 4 * C), lambda b, i: (b, i, 0)),
            pl.BlockSpec((1, C), lambda b, i: (0, 0)),
            pl.BlockSpec((1, C), lambda b, i: (0, 0)),
            pl.BlockSpec((4, C, 2 * C), lambda b, i: (0, 0, 0)),
        ],
        out_specs=pl.BlockSpec((1, 2 * C, M), lambda b, i: (b, 0, i)),
        compiler_params=pltpu.CompilerParams(**compiler_kwargs),
    )(x, params["gamma"], params["beta"], params["w_taps"])

    return out.reshape(B, 2 * C, Ho, Wo)             # free row-major split -> NCHW


# ---------------- deterministic parameter init (synthetic) ----------------
def init_params(key, dim):
    k1, k2, k3 = jax.random.split(key, 3)
    # PyTorch layout: Conv2d(dim, 2*dim, (2,2), stride=2, bias=False) -> (2*dim, dim, 2, 2)
    w_pt = jax.random.normal(k1, (2 * dim, dim, 2, 2), jnp.float32) / math.sqrt(4 * dim)
    gamma = 1.0 + 0.1 * jax.random.normal(k2, (dim,), jnp.float32)
    beta = 0.1 * jax.random.normal(k3, (dim,), jnp.float32)

    w_hwio = jnp.transpose(w_pt, (2, 3, 1, 0))                       # (kh, kw, Cin, Cout)
    return {
        "w_taps": w_hwio.reshape(4, dim, 2 * dim).astype(jnp.bfloat16),  # tap = kh*2+kw
        "gamma": gamma.reshape(1, dim),
        "beta": beta.reshape(1, dim),
        # f32 raw forms for the pure-JAX reference
        "_w_hwio": w_hwio, "_gamma": gamma, "_beta": beta,
    }


# ---------------- pure-JAX reference (for correctness check) ----------------
def _ref_patch_merging(x_nchw, p):
    x = jnp.transpose(x_nchw, (0, 2, 3, 1))                          # NHWC
    mean = jnp.mean(x, axis=-1, keepdims=True)
    var = jnp.var(x, axis=-1, keepdims=True)
    xn = (x - mean) * lax.rsqrt(var + LN_EPS) * p["_gamma"] + p["_beta"]
    y = lax.conv_general_dilated(
        xn, p["_w_hwio"], window_strides=(2, 2), padding="VALID",
        dimension_numbers=("NHWC", "HWIO", "NHWC"))
    return jnp.transpose(y, (0, 3, 1, 2))


if __name__ == "__main__":
    # Small shapes consistent with the module: NCHW input, even spatial dims.
    N, C, H, W = 2, 64, 16, 16
    key = jax.random.PRNGKey(0)
    kx, kp = jax.random.split(key)
    x = jax.random.normal(kx, (N, C, H, W), jnp.float32)
    params = init_params(kp, C)

    fwd = jax.jit(patch_merging)
    out = jax.block_until_ready(fwd(x, params))
    ref = jax.block_until_ready(_ref_patch_merging(x, params))

    assert out.shape == (N, 2 * C, H // 2, W // 2), out.shape
    max_err = float(jnp.max(jnp.abs(out - ref)))
    assert max_err < 8e-2, f"max abs err {max_err}"
    print("KERNEL_OK")
</pallas_src>

<mosaic_0001>
module attributes {stable_mosaic.version = 11 : i64} {
  func.func @_patch_merging_kernel(%arg0: i32, %arg1: i32, %arg2: memref<1x64x256xbf16, #tpu.memory_space<vmem>>, %arg3: memref<1x64xf32, #tpu.memory_space<vmem>>, %arg4: memref<1x64xf32, #tpu.memory_space<vmem>>, %arg5: memref<4x64x128xbf16, #tpu.memory_space<vmem>>, %arg6: memref<1x128x64xf32, #tpu.memory_space<vmem>>) attributes {dimension_semantics = [#tpu.dimension_semantics<parallel>, #tpu.dimension_semantics<parallel>], iteration_bounds = array<i64: 2, 1>, scalar_prefetch = 0 : i64, scratch_operands = 0 : i64, tpu.core_type = #tpu.core_type<tc>, window_params = [{transform_indices = @transform_0, window_bounds = array<i64: 1, 64, 256>}, {pipeline_mode = #tpu.pipeline_mode<synchronous>, transform_indices = @transform_1, window_bounds = array<i64: 1, 64>}, {pipeline_mode = #tpu.pipeline_mode<synchronous>, transform_indices = @transform_2, window_bounds = array<i64: 1, 64>}, {pipeline_mode = #tpu.pipeline_mode<synchronous>, transform_indices = @transform_3, window_bounds = array<i64: 4, 64, 128>}, {transform_indices = @transform_4, window_bounds = array<i64: 1, 128, 64>}]} {
    %c0 = arith.constant 0 : index
    %c0_0 = arith.constant 0 : index
    %c0_1 = arith.constant 0 : index
    %0 = vector.load %arg2[%c0, %c0_0, %c0_1] : memref<1x64x256xbf16, #tpu.memory_space<vmem>>, vector<1x64x256xbf16>
    %1 = vector.shape_cast %0 : vector<1x64x256xbf16> to vector<64x256xbf16>
    %2 = arith.extf %1 : vector<64x256xbf16> to vector<64x256xf32>
    %c0_2 = arith.constant 0 : index
    %c0_3 = arith.constant 0 : index
    %3 = vector.load %arg3[%c0_2, %c0_3] : memref<1x64xf32, #tpu.memory_space<vmem>>, vector<1x64xf32>
    %c0_4 = arith.constant 0 : index
    %c0_5 = arith.constant 0 : index
    %4 = vector.load %arg4[%c0_4, %c0_5] : memref<1x64xf32, #tpu.memory_space<vmem>>, vector<1x64xf32>
    %cst = arith.constant 0.000000e+00 : f32
    %5 = vector.broadcast %cst : f32 to vector<64x128xf32>
    %6 = vector.extract_strided_slice %2 {offsets = [0, 0], sizes = [64, 64], strides = [1, 1]} : vector<64x256xf32> to vector<64x64xf32>
    %cst_6 = arith.constant dense<0.000000e+00> : vector<64xf32>
    %7 = vector.multi_reduction <add>, %6, %cst_6 [1] : vector<64x64xf32> to vector<64xf32>
    %8 = vector.shape_cast %7 : vector<64xf32> to vector<64x1xf32>
    %cst_7 = arith.constant 6.400000e+01 : f32
    %9 = vector.broadcast %cst_7 : f32 to vector<64x1xf32>
    %10 = arith.divf %8, %9 : vector<64x1xf32>
    %11 = vector.broadcast %10 : vector<64x1xf32> to vector<64x64xf32>
    %12 = arith.subf %6, %11 : vector<64x64xf32>
    %13 = arith.mulf %12, %12 : vector<64x64xf32>
    %cst_8 = arith.constant dense<0.000000e+00> : vector<64xf32>
    %14 = vector.multi_reduction <add>, %13, %cst_8 [1] : vector<64x64xf32> to vector<64xf32>
    %15 = vector.shape_cast %14 : vector<64xf32> to vector<64x1xf32>
    %cst_9 = arith.constant 6.400000e+01 : f32
    %16 = vector.broadcast %cst_9 : f32 to vector<64x1xf32>
    %17 = arith.divf %15, %16 : vector<64x1xf32>
    %cst_10 = arith.constant 9.99999974E-6 : f32
    %18 = vector.broadcast %cst_10 : f32 to vector<64x1xf32>
    %19 = arith.addf %17, %18 : vector<64x1xf32>
    %20 = math.rsqrt %19 : vector<64x1xf32>
    %21 = vector.broadcast %20 : vector<64x1xf32> to vector<64x64xf32>
    %22 = arith.mulf %12, %21 : vector<64x64xf32>
    %23 = vector.broadcast %3 : vector<1x64xf32> to vector<64x64xf32>
    %24 = arith.mulf %22, %23 : vector<64x64xf32>
    %25 = vector.broadcast %4 : vector<1x64xf32> to vector<64x64xf32>
    %26 = arith.addf %24, %25 : vector<64x64xf32>
    %27 = arith.truncf %26 : vector<64x64xf32> to vector<64x64xbf16>
    %c0_11 = arith.constant 0 : index
    %c0_12 = arith.constant 0 : index
    %c0_13 = arith.constant 0 : index
    %28 = vector.load %arg5[%c0_11, %c0_12, %c0_13] : memref<4x64x128xbf16, #tpu.memory_space<vmem>>, vector<1x64x128xbf16>
    %29 = vector.shape_cast %28 : vector<1x64x128xbf16> to vector<64x128xbf16>
    %cst_14 = arith.constant dense<0.000000e+00> : vector<64x128xf32>
    %30 = tpu.matmul %27, %29, %cst_14 {dimension_numbers = #tpu.dot_dimension_numbers<[1], [0], [0], [1], [0, 0, 1, 1], [], []>} : vector<64x64xbf16>, vector<64x128xbf16>, vector<64x128xf32> -> vector<64x128xf32>
    %31 = arith.addf %5, %30 : vector<64x128xf32>
    %32 = vector.extract_strided_slice %2 {offsets = [0, 64], sizes = [64, 64], strides = [1, 1]} : vector<64x256xf32> to vector<64x64xf32>
    %cst_15 = arith.constant dense<0.000000e+00> : vector<64xf32>
    %33 = vector.multi_reduction <add>, %32, %cst_15 [1] : vector<64x64xf32> to vector<64xf32>
    %34 = vector.shape_cast %33 : vector<64xf32> to vector<64x1xf32>
    %cst_16 = arith.constant 6.400000e+01 : f32
    %35 = vector.broadcast %cst_16 : f32 to vector<64x1xf32>
    %36 = arith.divf %34, %35 : vector<64x1xf32>
    %37 = vector.broadcast %36 : vector<64x1xf32> to vector<64x64xf32>
    %38 = arith.subf %32, %37 : vector<64x64xf32>
    %39 = arith.mulf %38, %38 : vector<64x64xf32>
    %cst_17 = arith.constant dense<0.000000e+00> : vector<64xf32>
    %40 = vector.multi_reduction <add>, %39, %cst_17 [1] : vector<64x64xf32> to vector<64xf32>
    %41 = vector.shape_cast %40 : vector<64xf32> to vector<64x1xf32>
    %cst_18 = arith.constant 6.400000e+01 : f32
    %42 = vector.broadcast %cst_18 : f32 to vector<64x1xf32>
    %43 = arith.divf %41, %42 : vector<64x1xf32>
    %cst_19 = arith.constant 9.99999974E-6 : f32
    %44 = vector.broadcast %cst_19 : f32 to vector<64x1xf32>
    %45 = arith.addf %43, %44 : vector<64x1xf32>
    %46 = math.rsqrt %45 : vector<64x1xf32>
    %47 = vector.broadcast %46 : vector<64x1xf32> to vector<64x64xf32>
    %48 = arith.mulf %38, %47 : vector<64x64xf32>
    %49 = vector.broadcast %3 : vector<1x64xf32> to vector<64x64xf32>
    %50 = arith.mulf %48, %49 : vector<64x64xf32>
    %51 = vector.broadcast %4 : vector<1x64xf32> to vector<64x64xf32>
    %52 = arith.addf %50, %51 : vector<64x64xf32>
    %53 = arith.truncf %52 : vector<64x64xf32> to vector<64x64xbf16>
    %c1 = arith.constant 1 : index
    %c0_20 = arith.constant 0 : index
    %c0_21 = arith.constant 0 : index
    %54 = vector.load %arg5[%c1, %c0_20, %c0_21] : memref<4x64x128xbf16, #tpu.memory_space<vmem>>, vector<1x64x128xbf16>
    %55 = vector.shape_cast %54 : vector<1x64x128xbf16> to vector<64x128xbf16>
    %cst_22 = arith.constant dense<0.000000e+00> : vector<64x128xf32>
    %56 = tpu.matmul %53, %55, %cst_22 {dimension_numbers = #tpu.dot_dimension_numbers<[1], [0], [0], [1], [0, 0, 1, 1], [], []>} : vector<64x64xbf16>, vector<64x128xbf16>, vector<64x128xf32> -> vector<64x128xf32>
    %57 = arith.addf %31, %56 : vector<64x128xf32>
    %58 = vector.extract_strided_slice %2 {offsets = [0, 128], sizes = [64, 64], strides = [1, 1]} : vector<64x256xf32> to vector<64x64xf32>
    %cst_23 = arith.constant dense<0.000000e+00> : vector<64xf32>
    %59 = vector.multi_reduction <add>, %58, %cst_23 [1] : vector<64x64xf32> to vector<64xf32>
    %60 = vector.shape_cast %59 : vector<64xf32> to vector<64x1xf32>
    %cst_24 = arith.constant 6.400000e+01 : f32
    %61 = vector.broadcast %cst_24 : f32 to vector<64x1xf32>
    %62 = arith.divf %60, %61 : vector<64x1xf32>
    %63 = vector.broadcast %62 : vector<64x1xf32> to vector<64x64xf32>
    %64 = arith.subf %58, %63 : vector<64x64xf32>
    %65 = arith.mulf %64, %64 : vector<64x64xf32>
    %cst_25 = arith.constant dense<0.000000e+00> : vector<64xf32>
    %66 = vector.multi_reduction <add>, %65, %cst_25 [1] : vector<64x64xf32> to vector<64xf32>
    %67 = vector.shape_cast %66 : vector<64xf32> to vector<64x1xf32>
    %cst_26 = arith.constant 6.400000e+01 : f32
    %68 = vector.broadcast %cst_26 : f32 to vector<64x1xf32>
    %69 = arith.divf %67, %68 : vector<64x1xf32>
    %cst_27 = arith.constant 9.99999974E-6 : f32
    %70 = vector.broadcast %cst_27 : f32 to vector<64x1xf32>
    %71 = arith.addf %69, %70 : vector<64x1xf32>
    %72 = math.rsqrt %71 : vector<64x1xf32>
    %73 = vector.broadcast %72 : vector<64x1xf32> to vector<64x64xf32>
    %74 = arith.mulf %64, %73 : vector<64x64xf32>
    %75 = vector.broadcast %3 : vector<1x64xf32> to vector<64x64xf32>
    %76 = arith.mulf %74, %75 : vector<64x64xf32>
    %77 = vector.broadcast %4 : vector<1x64xf32> to vector<64x64xf32>
    %78 = arith.addf %76, %77 : vector<64x64xf32>
    %79 = arith.truncf %78 : vector<64x64xf32> to vector<64x64xbf16>
    %c2 = arith.constant 2 : index
    %c0_28 = arith.constant 0 : index
    %c0_29 = arith.constant 0 : index
    %80 = vector.load %arg5[%c2, %c0_28, %c0_29] : memref<4x64x128xbf16, #tpu.memory_space<vmem>>, vector<1x64x128xbf16>
    %81 = vector.shape_cast %80 : vector<1x64x128xbf16> to vector<64x128xbf16>
    %cst_30 = arith.constant dense<0.000000e+00> : vector<64x128xf32>
    %82 = tpu.matmul %79, %81, %cst_30 {dimension_numbers = #tpu.dot_dimension_numbers<[1], [0], [0], [1], [0, 0, 1, 1], [], []>} : vector<64x64xbf16>, vector<64x128xbf16>, vector<64x128xf32> -> vector<64x128xf32>
    %83 = arith.addf %57, %82 : vector<64x128xf32>
    %84 = vector.extract_strided_slice %2 {offsets = [0, 192], sizes = [64, 64], strides = [1, 1]} : vector<64x256xf32> to vector<64x64xf32>
    %cst_31 = arith.constant dense<0.000000e+00> : vector<64xf32>
    %85 = vector.multi_reduction <add>, %84, %cst_31 [1] : vector<64x64xf32> to vector<64xf32>
    %86 = vector.shape_cast %85 : vector<64xf32> to vector<64x1xf32>
    %cst_32 = arith.constant 6.400000e+01 : f32
    %87 = vector.broadcast %cst_32 : f32 to vector<64x1xf32>
    %88 = arith.divf %86, %87 : vector<64x1xf32>
    %89 = vector.broadcast %88 : vector<64x1xf32> to vector<64x64xf32>
    %90 = arith.subf %84, %89 : vector<64x64xf32>
    %91 = arith.mulf %90, %90 : vector<64x64xf32>
    %cst_33 = arith.constant dense<0.000000e+00> : vector<64xf32>
    %92 = vector.multi_reduction <add>, %91, %cst_33 [1] : vector<64x64xf32> to vector<64xf32>
    %93 = vector.shape_cast %92 : vector<64xf32> to vector<64x1xf32>
    %cst_34 = arith.constant 6.400000e+01 : f32
    %94 = vector.broadcast %cst_34 : f32 to vector<64x1xf32>
    %95 = arith.divf %93, %94 : vector<64x1xf32>
    %cst_35 = arith.constant 9.99999974E-6 : f32
    %96 = vector.broadcast %cst_35 : f32 to vector<64x1xf32>
    %97 = arith.addf %95, %96 : vector<64x1xf32>
    %98 = math.rsqrt %97 : vector<64x1xf32>
    %99 = vector.broadcast %98 : vector<64x1xf32> to vector<64x64xf32>
    %100 = arith.mulf %90, %99 : vector<64x64xf32>
    %101 = vector.broadcast %3 : vector<1x64xf32> to vector<64x64xf32>
    %102 = arith.mulf %100, %101 : vector<64x64xf32>
    %103 = vector.broadcast %4 : vector<1x64xf32> to vector<64x64xf32>
    %104 = arith.addf %102, %103 : vector<64x64xf32>
    %105 = arith.truncf %104 : vector<64x64xf32> to vector<64x64xbf16>
    %c3 = arith.constant 3 : index
    %c0_36 = arith.constant 0 : index
    %c0_37 = arith.constant 0 : index
    %106 = vector.load %arg5[%c3, %c0_36, %c0_37] : memref<4x64x128xbf16, #tpu.memory_space<vmem>>, vector<1x64x128xbf16>
    %107 = vector.shape_cast %106 : vector<1x64x128xbf16> to vector<64x128xbf16>
    %cst_38 = arith.constant dense<0.000000e+00> : vector<64x128xf32>
    %108 = tpu.matmul %105, %107, %cst_38 {dimension_numbers = #tpu.dot_dimension_numbers<[1], [0], [0], [1], [0, 0, 1, 1], [], []>} : vector<64x64xbf16>, vector<64x128xbf16>, vector<64x128xf32> -> vector<64x128xf32>
    %109 = arith.addf %83, %108 : vector<64x128xf32>
    %110 = tpu.transpose %109, [1, 0] : vector<64x128xf32> -> vector<128x64xf32>
    %c0_39 = arith.constant 0 : index
    %c0_40 = arith.constant 0 : index
    %c0_41 = arith.constant 0 : index
    %111 = vector.load %arg6[%c0_39, %c0_40, %c0_41] : memref<1x128x64xf32, #tpu.memory_space<vmem>>, vector<1x128x64xf32>
    %112 = vector.shape_cast %111 : vector<1x128x64xf32> to vector<128x64xf32>
    %113 = vector.shape_cast %110 : vector<128x64xf32> to vector<1x128x64xf32>
    tpu.vector_store %arg6[%c0_39, %c0_40, %c0_41], %113 {strides = array<i32>} : memref<1x128x64xf32, #tpu.memory_space<vmem>>, vector<1x128x64xf32>,
    return
  }
  func.func @transform_0(%arg0: i32, %arg1: i32) -> (i32, i32, i32) {
    %c0_i32 = arith.constant 0 : i32
    %c0_i32_0 = arith.constant 0 : i32
    return %arg0, %arg1, %c0_i32 : i32, i32, i32
  }
  func.func @transform_1(%arg0: i32, %arg1: i32) -> (i32, i32) {
    %c0_i32 = arith.constant 0 : i32
    %c0_i32_0 = arith.constant 0 : i32
    %c0_i32_1 = arith.constant 0 : i32
    return %c0_i32, %c0_i32_0 : i32, i32
  }
  func.func @transform_2(%arg0: i32, %arg1: i32) -> (i32, i32) {
    %c0_i32 = arith.constant 0 : i32
    %c0_i32_0 = arith.constant 0 : i32
    %c0_i32_1 = arith.constant 0 : i32
    return %c0_i32, %c0_i32_0 : i32, i32
  }
  func.func @transform_3(%arg0: i32, %arg1: i32) -> (i32, i32, i32) {
    %c0_i32 = arith.constant 0 : i32
    %c0_i32_0 = arith.constant 0 : i32
    %c0_i32_1 = arith.constant 0 : i32
    %c0_i32_2 = arith.constant 0 : i32
    return %c0_i32, %c0_i32_0, %c0_i32_1 : i32, i32, i32
  }
  func.func @transform_4(%arg0: i32, %arg1: i32) -> (i32, i32, i32) {
    %c0_i32 = arith.constant 0 : i32
    %c0_i32_0 = arith.constant 0 : i32
    return %arg0, %c0_i32, %arg1 : i32, i32, i32
  }
}

</mosaic_0001>

<llo_original>
// kernel: patch_merging.1
$region0: #{patch_merging.1}
  #allocation0 [shape = 'u32[]', space=smem, size = 0x4, offset = 0x4, fixed_abs, tag = 'smem constant byte address 0x4 - core index']
  #allocation1 [shape = 'u32[144,128]{1,0:T(1,128)}', space=vmem, size = 0x12000, scoped, tag = 'internal scratch']
  %s0 = inlined_call_operand.vmem [shape: bf16[2,64,256], index: 0, kind: input, shape index: {}]
  %s1 = inlined_call_operand.vmem [shape: f32[1,64], index: 1, kind: input, shape index: {}]
  %s2 = inlined_call_operand.vmem [shape: f32[1,64], index: 2, kind: input, shape index: {}]
  %s3 = inlined_call_operand.vmem [shape: bf16[4,64,128], index: 3, kind: input, shape index: {}]
  %s4 = inlined_call_operand.vmem [shape: f32[2,128,64], index: 4, kind: output, shape index: {}]
  %s5 = sld [smem:[#allocation0]]
  $region49: #{patch_merging.1} parent=0
    _
  %s7 = ssub.s32 1, %s5
  %s8 = scalar_select 0, %s7, %s5
  loop: start=0, step=1, limit=4
  $region2: #{patch_merging.1} parent=0 // loop_pre_header
    _
  $region3: #{patch_merging.1} parent=0 // loop_header
    %s10 = sphi 0, %s14
    %p11 = scmp.ge.s32.totalorder %s10, 4
    %s17 = sphi 0, %s29
    %s18 = sphi 0, %s25
    %s19 = sphi 0, %s17
    %s20 = sphi 0, %s18
    %s21 = sphi 0, %s19
    %s22 = sphi 0, %s20
    %s34 = sphi 0, %s36
    %s37 = sphi 0, %s34
    %s38 = sphi 0, %s37
    %s54 = sphi 0, %s38
    %s58 = sphi 0, %s58
    %s60 = sphi 0, %s58
    %s61 = sphi 0, %s60
    %s75 = sphi 0, %s61
    %s79 = sphi 0, %s79
    %s81 = sphi 0, %s79
    %s82 = sphi 0, %s81
    %s96 = sphi 0, %s82
    %s100 = sphi 0, %s100
    %s102 = sphi 0, %s100
    %s103 = sphi 0, %s102
    %s117 = sphi 0, %s103
    %s125 = sphi 0, %s127
    %s128 = sphi 0, %s125
    %s129 = sphi 0, %s128
    %s145 = sphi 0, %s129
  $region4: #{patch_merging.1} parent=0 // loop_header_branch
    %13 = sbr.rel (%p11) target = $region8
  $region5: #{patch_merging.1} parent=0 // loop_body
    %s15 = ssub.s32 %s10, 1
    %s16 = ssub.s32 %s10, 2
    %s23 = sadd.s32 1, %s18
    %p24 = scmp.ge.s32.totalorder %s23, 1
    %s25 = scalar_select %p24, 0, %s23
    %s26 = sadd.s32 1, %s17
    %s27 = scalar_select %p24, %s26, %s17
    %p28 = scmp.ge.s32.totalorder %s27, 2
    %s29 = scalar_select %p28, 0, %s27
    %s30 = ssub.s32 %s17, %s29
    %s31 = ssub.s32 %s18, %s25
    %s32 = sor.u32 %s30, %s31
    %p33 = scmp.eq.s32.totalorder %s32, 0
    %s35 = sadd.s32 %s34, 1
    %s36 = scalar_select %p33, %s34, %s35
    %p39 = pneg %p33
    %p40 = scmp.eq.s32.totalorder %s10, 1
    %p41 = por %p39, %p40
    %p42 = scmp.ne.s32.totalorder %s34, %s37
    %p43 = scmp.eq.s32.totalorder %s10, 0
    %p44 = por %p42, %p43
    %p45 = scmp.ne.s32.totalorder %s34, %s37
    %p46 = scmp.eq.s32.totalorder %s15, 1
    %p47 = por %p45, %p46
    %p48 = scmp.ne.s32.totalorder %s37, %s38
    %p49 = scmp.eq.s32.totalorder %s15, 0
    %p50 = por %p48, %p49
    %p51 = scmp.ne.s32.totalorder %s37, %s38
    %p52 = scmp.eq.s32.totalorder %s16, 1
    %p53 = por %p51, %p52
    %p55 = scmp.ne.s32.totalorder %s38, %s54
    %p56 = scmp.eq.s32.totalorder %s16, 0
    %p57 = por %p55, %p56
    %s59 = sadd.s32 %s58, 1
    %p62 = scmp.eq.s32.totalorder %s10, 1
    %p63 = scmp.ne.s32.totalorder %s58, %s60
    %p64 = scmp.eq.s32.totalorder %s10, 0
    %p65 = por %p63, %p64
    %p66 = scmp.ne.s32.totalorder %s58, %s60
    %p67 = scmp.eq.s32.totalorder %s15, 1
    %p68 = por %p66, %p67
    %p69 = scmp.ne.s32.totalorder %s60, %s61
    %p70 = scmp.eq.s32.totalorder %s15, 0
    %p71 = por %p69, %p70
    %p72 = scmp.ne.s32.totalorder %s60, %s61
    %p73 = scmp.eq.s32.totalorder %s16, 1
    %p74 = por %p72, %p73
    %p76 = scmp.ne.s32.totalorder %s61, %s75
    %p77 = scmp.eq.s32.totalorder %s16, 0
    %p78 = por %p76, %p77
    %s80 = sadd.s32 %s79, 1
    %p83 = scmp.eq.s32.totalorder %s10, 1
    %p84 = scmp.ne.s32.totalorder %s79, %s81
    %p85 = scmp.eq.s32.totalorder %s10, 0
    %p86 = por %p84, %p85
    %p87 = scmp.ne.s32.totalorder %s79, %s81
    %p88 = scmp.eq.s32.totalorder %s15, 1
    %p89 = por %p87, %p88
    %p90 = scmp.ne.s32.totalorder %s81, %s82
    %p91 = scmp.eq.s32.totalorder %s15, 0
    %p92 = por %p90, %p91
    %p93 = scmp.ne.s32.totalorder %s81, %s82
    %p94 = scmp.eq.s32.totalorder %s16, 1
    %p95 = por %p93, %p94
    %p97 = scmp.ne.s32.totalorder %s82, %s96
    %p98 = scmp.eq.s32.totalorder %s16, 0
    %p99 = por %p97, %p98
    %s101 = sadd.s32 %s100, 1
    %p104 = scmp.eq.s32.totalorder %s10, 1
    %p105 = scmp.ne.s32.totalorder %s100, %s102
    %p106 = scmp.eq.s32.totalorder %s10, 0
    %p107 = por %p105, %p106
    %p108 = scmp.ne.s32.totalorder %s100, %s102
    %p109 = scmp.eq.s32.totalorder %s15, 1
    %p110 = por %p108, %p109
    %p111 = scmp.ne.s32.totalorder %s102, %s103
    %p112 = scmp.eq.s32.totalorder %s15, 0
    %p113 = por %p111, %p112
    %p114 = scmp.ne.s32.totalorder %s102, %s103
    %p115 = scmp.eq.s32.totalorder %s16, 1
    %p116 = por %p114, %p115
    %p118 = scmp.ne.s32.totalorder %s103, %s117
    %p119 = scmp.eq.s32.totalorder %s16, 0
    %p120 = por %p118, %p119
    %s121 = ssub.s32 %s17, %s29
    %s122 = ssub.s32 %s18, %s25
    %s123 = sor.u32 %s121, %s122
    %p124 = scmp.eq.s32.totalorder %s123, 0
    %s126 = sadd.s32 %s125, 1
    %s127 = scalar_select %p124, %s125, %s126
    %p130 = pneg %p124
    %p131 = scmp.eq.s32.totalorder %s10, 1
    %p132 = por %p130, %p131
    %p133 = scmp.ne.s32.totalorder %s125, %s128
    %p134 = scmp.eq.s32.totalorder %s10, 0
    %p135 = por %p133, %p134
    %p136 = scmp.ne.s32.totalorder %s125, %s128
    %p137 = scmp.eq.s32.totalorder %s15, 1
    %p138 = por %p136, %p137
    %p139 = scmp.ne.s32.totalorder %s128, %s129
    %p140 = scmp.eq.s32.totalorder %s15, 0
    %p141 = por %p139, %p140
    %p142 = scmp.ne.s32.totalorder %s128, %s129
    %p143 = scmp.eq.s32.totalorder %s16, 1
    %p144 = por %p142, %p143
    %p146 = scmp.ne.s32.totalorder %s129, %s145
    %p147 = scmp.eq.s32.totalorder %s16, 0
    %p148 = por %p146, %p147
    %p149 = scmp.le.s32.totalorder 1, %s10
    %p150 = scmp.lt.s32.totalorder %s10, 3
    %p151 = pnand %p149, %p150
    %p152 = pneg %p151
    // Predicated region
    $region9: #{patch_merging.1} parent=5 // pred_check
      _
    $region10: #{patch_merging.1} parent=5 // pred_check_branch
      %154 = sbr.rel (%p151) target = $region12
    $region11: #{patch_merging.1} parent=5 // pred_region
      %s155 = ssub.s32 %s10, 1
      // Predicated region
      $region13: #{patch_merging.1} parent=11 // pred_check
        %p156 = pneg %p71
      $region14: #{patch_merging.1} parent=11 // pred_check_branch
        %158 = sbr.rel (%p156) target = $region16
      $region15: #{patch_merging.1} parent=11 // pred_region
        _
      $region16: #{patch_merging.1} parent=11 // pred_fallthru
        _
      // Predicated region
      $region17: #{patch_merging.1} parent=11 // pred_check
        %p159 = pneg %p92
      $region18: #{patch_merging.1} parent=11 // pred_check_branch
        %161 = sbr.rel (%p159) target = $region20
      $region19: #{patch_merging.1} parent=11 // pred_region
        _
      $region20: #{patch_merging.1} parent=11 // pred_fallthru
        _
      // Predicated region
      $region21: #{patch_merging.1} parent=11 // pred_check
        %p162 = pneg %p113
      $region22: #{patch_merging.1} parent=11 // pred_check_branch
        %164 = sbr.rel (%p162) target = $region24
      $region23: #{patch_merging.1} parent=11 // pred_region
        _
      $region24: #{patch_merging.1} parent=11 // pred_fallthru
        _
    $region12: #{patch_merging.1} parent=5 // pred_fallthru
      _
    %p165 = scmp.lt.s32.totalorder %s10, 2
    // Predicated region
    $region25: #{patch_merging.1} parent=5 // pred_check
      %p166 = pneg %p165
    $region26: #{patch_merging.1} parent=5 // pred_check_branch
      %168 = sbr.rel (%p166) target = $region28
    $region27: #{patch_merging.1} parent=5 // pred_region
      // Predicated region
      $region29: #{patch_merging.1} parent=27 // pred_check
        %p169 = pneg %p44
      $region30: #{patch_merging.1} parent=27 // pred_check_branch
        %171 = sbr.rel (%p169) target = $region32
      $region31: #{patch_merging.1} parent=27 // pred_region
        %s172 = smul.u32 8, %s18
        %p173 = scmp.lt.s32.totalorder %s17, 1
        %s174 = scalar_select %p173, %s17, 1
        %p175 = scmp.lt.s32.totalorder %s172, 7
        %s176 = scalar_select %p175, %s172, 7
        %s177 = smul.addr %s176, 2
        %s178 = smul.addr %s174, 16
        %s179 = sadd.s32 %s177, %s178
        %s180 = smul.addr %s179, 4
        %s181 = scalar_lea.vmem %s0, %s180
        %s182 = smul.u32 8, %s18
      $region32: #{patch_merging.1} parent=27 // pred_fallthru
        _
    $region28: #{patch_merging.1} parent=5 // pred_fallthru
      _
    %p183 = scmp.le.s32.totalorder 1, %s10
    %p184 = scmp.lt.s32.totalorder %s10, 3
    %p185 = pnand %p183, %p184
    %p186 = pneg %p185
    // Predicated region
    $region33: #{patch_merging.1} parent=5 // pred_check
      _
    $region34: #{patch_merging.1} parent=5 // pred_check_branch
      %188 = sbr.rel (%p185) target = $region36
    $region35: #{patch_merging.1} parent=5 // pred_region
      %s189 = ssub.s32 %s10, 1
      %s190 = smul.u32 8, %s20
      %p191 = scmp.lt.s32.totalorder %s19, 1
      %s192 = scalar_select %p191, %s19, 1
      %p193 = scmp.lt.s32.totalorder %s190, 7
      %s194 = scalar_select %p193, %s190, 7
      %s195 = smul.addr %s194, 2
      %s196 = smul.addr %s192, 16
      %s197 = sadd.s32 %s195, %s196
      %s198 = smul.addr %s197, 4
      %s199 = scalar_lea.vmem %s0, %s198
      %p200 = pneg %p50
      %p201 = pneg %p47
      %p202 = pneg %p71
      %p203 = pneg %p68
      %p204 = pneg %p92
      %p205 = pneg %p89
      %p206 = pneg %p113
      %p207 = pneg %p110
      %p208 = pneg %p141
      %p209 = pneg %p138
      %p210 = scmp.lt.s32.totalorder %s19, 1
      %s211 = scalar_select %p210, %s19, 1
      %p212 = scmp.lt.s32.totalorder %s20, 0
      %s213 = scalar_select %p212, %s20, 0
      %s214 = smul.addr %s211, 16
      %s215 = sadd.s32 %s213, %s214
      %s216 = smul.addr %s215, 8
      %s217 = scalar_lea.vmem %s4, %s216
      %s218 = smul.u32 8, %s20
      %p219 = scmp.lt.s32.totalorder %s19, 1
      %s220 = scalar_select %p219, %s19, 1
      %p221 = scmp.lt.s32.totalorder %s218, 7
      %s222 = scalar_select %p221, %s218, 7
      %s223 = smul.addr %s222, 2
      %s224 = smul.addr %s220, 16
      %s225 = sadd.s32 %s223, %s224
      %s226 = smul.addr %s225, 4
      %s227 = scalar_lea.vmem %s0, %s226
      %s228 = smul.u32 8, %s20
      %p229 = scmp.lt.s32.totalorder %s19, 1
      %s230 = scalar_select %p229, %s19, 1
      %p231 = scmp.lt.s32.totalorder %s20, 0
      %s232 = scalar_select %p231, %s20, 0
      %s233 = smul.addr %s230, 16
      %s234 = sadd.s32 %s232, %s233
      %s235 = smul.addr %s234, 8
      %s236 = scalar_lea.vmem %s4, %s235
      %v238 = vld [vmem:[%s227] sm:$0xff]
      %v239 = vld [vmem:[%s227 + $0x8] sm:$0xff]
      %v240 = vld [vmem:[%s227 + $0x10] sm:$0xff]
      %v241 = vld [vmem:[%s227 + $0x18] sm:$0xff]
      %v242 = vld [vmem:[%s227 + $0x20] sm:$0xff]
      %v243 = vld [vmem:[%s227 + $0x28] sm:$0xff]
      %v244 = vld [vmem:[%s227 + $0x30] sm:$0xff]
      %v245 = vld [vmem:[%s227 + $0x38] sm:$0xff]
      %v246 = vunpack.c.l.bf16 %v238
      %v247 = vunpack.c.h.bf16 %v238
      %v248 = vunpack.c.l.bf16 %v239
      %v249 = vunpack.c.h.bf16 %v239
      %v250 = vunpack.c.l.bf16 %v240
      %v251 = vunpack.c.h.bf16 %v240
      %v252 = vunpack.c.l.bf16 %v241
      %v253 = vunpack.c.h.bf16 %v241
      %v254 = vunpack.c.l.bf16 %v242
      %v255 = vunpack.c.h.bf16 %v242
      %v256 = vunpack.c.l.bf16 %v243
      %v257 = vunpack.c.h.bf16 %v243
      %v258 = vunpack.c.l.bf16 %v244
      %v259 = vunpack.c.h.bf16 %v244
      %v260 = vunpack.c.l.bf16 %v245
      %v261 = vunpack.c.h.bf16 %v245
      %v262 = vld [vmem:[%s1] sm:$0x1]
      %v263 = vld [vmem:[%s2] sm:$0x1]
      %vm264 = vcmask 523264
      %v265 = vsel %vm264, %v246, 0.0
      %266 = vadd.xlane.f32.xlu0 %v265
      %v267 = vpop.xlane.xlu0 %266
      %v268 = vsel %vm264, %v248, 0.0
      %269 = vadd.xlane.f32.xlu0 %v268
      %v270 = vpop.xlane.xlu0 %269
      %v271 = vsel %vm264, %v250, 0.0
      %272 = vadd.xlane.f32.xlu0 %v271
      %v273 = vpop.xlane.xlu0 %272
      %v274 = vsel %vm264, %v252, 0.0
      %275 = vadd.xlane.f32.xlu0 %v274
      %v276 = vpop.xlane.xlu0 %275
      %v277 = vsel %vm264, %v254, 0.0
      %278 = vadd.xlane.f32.xlu0 %v277
      %v279 = vpop.xlane.xlu0 %278
      %v280 = vsel %vm264, %v256, 0.0
      %281 = vadd.xlane.f32.xlu0 %v280
      %v282 = vpop.xlane.xlu0 %281
      %v283 = vsel %vm264, %v258, 0.0
      %284 = vadd.xlane.f32.xlu0 %v283
      %v285 = vpop.xlane.xlu0 %284
      %v286 = vsel %vm264, %v260, 0.0
      %287 = vadd.xlane.f32.xlu0 %v286
      %v288 = vpop.xlane.xlu0 %287
      %v289 = vrcp.pop 64.0
      %v290 = vmul.f32 %v267, %v289
      %v291 = vmul.f32 %v270, %v289
      %v292 = vmul.f32 %v273, %v289
      %v293 = vmul.f32 %v276, %v289
      %v294 = vmul.f32 %v279, %v289
      %v295 = vmul.f32 %v282, %v289
      %v296 = vmul.f32 %v285, %v289
      %v297 = vmul.f32 %v288, %v289
      %v298 = vsub.f32 %v246, %v290
      %v299 = vsub.f32 %v248, %v291
      %v300 = vsub.f32 %v250, %v292
      %v301 = vsub.f32 %v252, %v293
      %v302 = vsub.f32 %v254, %v294
      %v303 = vsub.f32 %v256, %v295
      %v304 = vsub.f32 %v258, %v296
      %v305 = vsub.f32 %v260, %v297
      %v306 = vmul.f32 %v298, %v298
      %v307 = vmul.f32 %v299, %v299
      %v308 = vmul.f32 %v300, %v300
      %v309 = vmul.f32 %v301, %v301
      %v310 = vmul.f32 %v302, %v302
      %v311 = vmul.f32 %v303, %v303
      %v312 = vmul.f32 %v304, %v304
      %v313 = vmul.f32 %v305, %v305
      %v314 = vsel %vm264, %v306, 0.0
      %315 = vadd.xlane.f32.xlu0 %v314
      %v316 = vpop.xlane.xlu0 %315
      %v317 = vsel %vm264, %v307, 0.0
      %318 = vadd.xlane.f32.xlu0 %v317
      %v319 = vpop.xlane.xlu0 %318
      %v320 = vsel %vm264, %v308, 0.0
      %321 = vadd.xlane.f32.xlu0 %v320
      %v322 = vpop.xlane.xlu0 %321
      %v323 = vsel %vm264, %v309, 0.0
      %324 = vadd.xlane.f32.xlu0 %v323
      %v325 = vpop.xlane.xlu0 %324
      %v326 = vsel %vm264, %v310, 0.0
      %327 = vadd.xlane.f32.xlu0 %v326
      %v328 = vpop.xlane.xlu0 %327
      %v329 = vsel %vm264, %v311, 0.0
      %330 = vadd.xlane.f32.xlu0 %v329
      %v331 = vpop.xlane.xlu0 %330
      %v332 = vsel %vm264, %v312, 0.0
      %333 = vadd.xlane.f32.xlu0 %v332
      %v334 = vpop.xlane.xlu0 %333
      %v335 = vsel %vm264, %v313, 0.0
      %336 = vadd.xlane.f32.xlu0 %v335
      %v337 = vpop.xlane.xlu0 %336
      %v338 = vmul.f32 %v316, %v289
      %v339 = vmul.f32 %v319, %v289
      %v340 = vmul.f32 %v322, %v289
      %v341 = vmul.f32 %v325, %v289
      %v342 = vmul.f32 %v328, %v289
      %v343 = vmul.f32 %v331, %v289
      %v344 = vmul.f32 %v334, %v289
      %v345 = vmul.f32 %v337, %v289
      %v346 = vadd.f32 %v338, 1e-05
      %v347 = vadd.f32 %v339, 1e-05
      %v348 = vadd.f32 %v340, 1e-05
      %v349 = vadd.f32 %v341, 1e-05
      %v350 = vadd.f32 %v342, 1e-05
      %v351 = vadd.f32 %v343, 1e-05
      %v352 = vadd.f32 %v344, 1e-05
      %v353 = vadd.f32 %v345, 1e-05
      %v354 = vrsqrt.pop %v346
      %v355 = vrsqrt.pop %v347
      %v356 = vrsqrt.pop %v348
      %v357 = vrsqrt.pop %v349
      %v358 = vrsqrt.pop %v350
      %v359 = vrsqrt.pop %v351
      %v360 = vrsqrt.pop %v352
      %v361 = vrsqrt.pop %v353
      %v362 = vmul.f32 %v298, %v354
      %v363 = vmul.f32 %v299, %v355
      %v364 = vmul.f32 %v300, %v356
      %v365 = vmul.f32 %v301, %v357
      %v366 = vmul.f32 %v302, %v358
      %v367 = vmul.f32 %v303, %v359
      %v368 = vmul.f32 %v304, %v360
      %v369 = vmul.f32 %v305, %v361
      %v371 = vlaneseq
      %v372 = vshrl.u32 %v371, 7
      %v373 = vsub.s32 0, %v372
      %v374 = vrot.slane %v262, %v373
      %v376 = vmul.f32 %v362, %v374
      %v377 = vmul.f32 %v363, %v374
      %v378 = vmul.f32 %v364, %v374
      %v379 = vmul.f32 %v365, %v374
      %v380 = vmul.f32 %v366, %v374
      %v381 = vmul.f32 %v367, %v374
      %v382 = vmul.f32 %v368, %v374
      %v383 = vmul.f32 %v369, %v374
      %v385 = vlaneseq
      %v386 = vshrl.u32 %v385, 7
      %v387 = vsub.s32 0, %v386
      %v388 = vrot.slane %v263, %v387
      %v390 = vadd.f32 %v376, %v388
      %v391 = vadd.f32 %v377, %v388
      %v392 = vadd.f32 %v378, %v388
      %v393 = vadd.f32 %v379, %v388
      %v394 = vadd.f32 %v380, %v388
      %v395 = vadd.f32 %v381, %v388
      %v396 = vadd.f32 %v382, %v388
      %v397 = vadd.f32 %v383, %v388
      %v398 = vpack.c.bf16 %v391, %v390
      %v399 = vpack.c.bf16 %v393, %v392
      %v400 = vpack.c.bf16 %v395, %v394
      %v401 = vpack.c.bf16 %v397, %v396
      %v402 = vld [vmem:[%s3] sm:$0xf]
      %v403 = vld [vmem:[%s3 + $0x4] sm:$0xf]
      %v404 = vld [vmem:[%s3 + $0x8] sm:$0xf]
      %v405 = vld [vmem:[%s3 + $0xc] sm:$0xf]
      %v406 = vld [vmem:[%s3 + $0x10] sm:$0xf]
      %v407 = vld [vmem:[%s3 + $0x14] sm:$0xf]
      %v408 = vld [vmem:[%s3 + $0x18] sm:$0xf]
      %v409 = vld [vmem:[%s3 + $0x1c] sm:$0xf]
      %418 = vrot.lane.b32.xlu0 %v246, 64
      %v419 = vpop.permute.xlu0 %418
      %420 = vrot.lane.b32.xlu0 %v248, 64
      %v421 = vpop.permute.xlu0 %420
      %422 = vrot.lane.b32.xlu0 %v250, 64
      %v423 = vpop.permute.xlu0 %422
      %424 = vrot.lane.b32.xlu0 %v252, 64
      %v425 = vpop.permute.xlu0 %424
      %426 = vrot.lane.b32.xlu0 %v254, 64
      %v427 = vpop.permute.xlu0 %426
      %428 = vrot.lane.b32.xlu0 %v256, 64
      %v429 = vpop.permute.xlu0 %428
      %430 = vrot.lane.b32.xlu0 %v258, 64
      %v431 = vpop.permute.xlu0 %430
      %432 = vrot.lane.b32.xlu0 %v260, 64
      %v433 = vpop.permute.xlu0 %432
      %v442 = vsel %vm264, %v419, 0.0
      %443 = vadd.xlane.f32.xlu0 %v442
      %v444 = vpop.xlane.xlu0 %443
      %v445 = vsel %vm264, %v421, 0.0
      %446 = vadd.xlane.f32.xlu0 %v445
      %v447 = vpop.xlane.xlu0 %446
      %v448 = vsel %vm264, %v423, 0.0
      %449 = vadd.xlane.f32.xlu0 %v448
      %v450 = vpop.xlane.xlu0 %449
      %v451 = vsel %vm264, %v425, 0.0
      %452 = vadd.xlane.f32.xlu0 %v451
      %v453 = vpop.xlane.xlu0 %452
      %v454 = vsel %vm264, %v427, 0.0
      %455 = vadd.xlane.f32.xlu0 %v454
      %v456 = vpop.xlane.xlu0 %455
      %v457 = vsel %vm264, %v429, 0.0
      %458 = vadd.xlane.f32.xlu0 %v457
      %v459 = vpop.xlane.xlu0 %458
      %v460 = vsel %vm264, %v431, 0.0
      %461 = vadd.xlane.f32.xlu0 %v460
      %v462 = vpop.xlane.xlu0 %461
      %v463 = vsel %vm264, %v433, 0.0
      %464 = vadd.xlane.f32.xlu0 %v463
      %v465 = vpop.xlane.xlu0 %464
      %v466 = vmul.f32 %v444, %v289
      %v467 = vmul.f32 %v447, %v289
      %v468 = vmul.f32 %v450, %v289
      %v469 = vmul.f32 %v453, %v289
      %v470 = vmul.f32 %v456, %v289
      %v471 = vmul.f32 %v459, %v289
      %v472 = vmul.f32 %v462, %v289
      %v473 = vmul.f32 %v465, %v289
      %v474 = vsub.f32 %v246, %v466
      %v475 = vsub.f32 %v248, %v467
      %v476 = vsub.f32 %v250, %v468
      %v477 = vsub.f32 %v252, %v469
      %v478 = vsub.f32 %v254, %v470
      %v479 = vsub.f32 %v256, %v471
      %v480 = vsub.f32 %v258, %v472
      %v481 = vsub.f32 %v260, %v473
      %v482 = vmul.f32 %v474, %v474
      %v483 = vmul.f32 %v475, %v475
      %v484 = vmul.f32 %v476, %v476
      %v485 = vmul.f32 %v477, %v477
      %v486 = vmul.f32 %v478, %v478
      %v487 = vmul.f32 %v479, %v479
      %v488 = vmul.f32 %v480, %v480
      %v489 = vmul.f32 %v481, %v481
      %498 = vrot.lane.b32.xlu0 %v482, 64
      %v499 = vpop.permute.xlu0 %498
      %500 = vrot.lane.b32.xlu0 %v483, 64
      %v501 = vpop.permute.xlu0 %500
      %502 = vrot.lane.b32.xlu0 %v484, 64
      %v503 = vpop.permute.xlu0 %502
      %504 = vrot.lane.b32.xlu0 %v485, 64
      %v505 = vpop.permute.xlu0 %504
      %506 = vrot.lane.b32.xlu0 %v486, 64
      %v507 = vpop.permute.xlu0 %506
      %508 = vrot.lane.b32.xlu0 %v487, 64
      %v509 = vpop.permute.xlu0 %508
      %510 = vrot.lane.b32.xlu0 %v488, 64
      %v511 = vpop.permute.xlu0 %510
      %512 = vrot.lane.b32.xlu0 %v489, 64
      %v513 = vpop.permute.xlu0 %512
      %v522 = vsel %vm264, %v499, 0.0
      %523 = vadd.xlane.f32.xlu0 %v522
      %v524 = vpop.xlane.xlu0 %523
      %v525 = vsel %vm264, %v501, 0.0
      %526 = vadd.xlane.f32.xlu0 %v525
      %v527 = vpop.xlane.xlu0 %526
      %v528 = vsel %vm264, %v503, 0.0
      %529 = vadd.xlane.f32.xlu0 %v528
      %v530 = vpop.xlane.xlu0 %529
      %v531 = vsel %vm264, %v505, 0.0
      %532 = vadd.xlane.f32.xlu0 %v531
      %v533 = vpop.xlane.xlu0 %532
      %v534 = vsel %vm264, %v507, 0.0
      %535 = vadd.xlane.f32.xlu0 %v534
      %v536 = vpop.xlane.xlu0 %535
      %v537 = vsel %vm264, %v509, 0.0
      %538 = vadd.xlane.f32.xlu0 %v537
      %v539 = vpop.xlane.xlu0 %538
      %v540 = vsel %vm264, %v511, 0.0
      %541 = vadd.xlane.f32.xlu0 %v540
      %v542 = vpop.xlane.xlu0 %541
      %v543 = vsel %vm264, %v513, 0.0
      %544 = vadd.xlane.f32.xlu0 %v543
      %v545 = vpop.xlane.xlu0 %544
      %v546 = vmul.f32 %v524, %v289
      %v547 = vmul.f32 %v527, %v289
      %v548 = vmul.f32 %v530, %v289
      %v549 = vmul.f32 %v533, %v289
      %v550 = vmul.f32 %v536, %v289
      %v551 = vmul.f32 %v539, %v289
      %v552 = vmul.f32 %v542, %v289
      %v553 = vmul.f32 %v545, %v289
      %v554 = vadd.f32 %v546, 1e-05
      %v555 = vadd.f32 %v547, 1e-05
      %v556 = vadd.f32 %v548, 1e-05
      %v557 = vadd.f32 %v549, 1e-05
      %v558 = vadd.f32 %v550, 1e-05
      %v559 = vadd.f32 %v551, 1e-05
      %v560 = vadd.f32 %v552, 1e-05
      %v561 = vadd.f32 %v553, 1e-05
      %v562 = vrsqrt.pop %v554
      %v563 = vrsqrt.pop %v555
      %v564 = vrsqrt.pop %v556
      %v565 = vrsqrt.pop %v557
      %v566 = vrsqrt.pop %v558
      %v567 = vrsqrt.pop %v559
      %v568 = vrsqrt.pop %v560
      %v569 = vrsqrt.pop %v561
      %v570 = vmul.f32 %v474, %v562
      %v571 = vmul.f32 %v475, %v563
      %v572 = vmul.f32 %v476, %v564
      %v573 = vmul.f32 %v477, %v565
      %v574 = vmul.f32 %v478, %v566
      %v575 = vmul.f32 %v479, %v567
      %v576 = vmul.f32 %v480, %v568
      %v577 = vmul.f32 %v481, %v569
      %578 = vrot.lane.b32.xlu0 %v374, 64
      %v579 = vpop.permute.xlu0 %578
      %v581 = vmul.f32 %v570, %v579
      %v582 = vmul.f32 %v571, %v579
      %v583 = vmul.f32 %v572, %v579
      %v584 = vmul.f32 %v573, %v579
      %v585 = vmul.f32 %v574, %v579
      %v586 = vmul.f32 %v575, %v579
      %v587 = vmul.f32 %v576, %v579
      %v588 = vmul.f32 %v577, %v579
      %589 = vrot.lane.b32.xlu0 %v388, 64
      %v590 = vpop.permute.xlu0 %589
      %v592 = vadd.f32 %v581, %v590
      %v593 = vadd.f32 %v582, %v590
      %v594 = vadd.f32 %v583, %v590
      %v595 = vadd.f32 %v584, %v590
      %v596 = vadd.f32 %v585, %v590
      %v597 = vadd.f32 %v586, %v590
      %v598 = vadd.f32 %v587, %v590
      %v599 = vadd.f32 %v588, %v590
      %v600 = vpack.c.bf16 %v593, %v592
      %v601 = vpack.c.bf16 %v595, %v594
      %v602 = vpack.c.bf16 %v597, %v596
      %v603 = vpack.c.bf16 %v599, %v598
      %s604 = scalar_lea.vmem %s3, 32
      %v605 = vld [vmem:[%s604] sm:$0xf]
      %v606 = vld [vmem:[%s604 + $0x4] sm:$0xf]
      %v607 = vld [vmem:[%s604 + $0x8] sm:$0xf]
      %v608 = vld [vmem:[%s604 + $0xc] sm:$0xf]
      %v609 = vld [vmem:[%s604 + $0x10] sm:$0xf]
      %v610 = vld [vmem:[%s604 + $0x14] sm:$0xf]
      %v611 = vld [vmem:[%s604 + $0x18] sm:$0xf]
      %v612 = vld [vmem:[%s604 + $0x1c] sm:$0xf]
      %617 = vrot.lane.b32.xlu0 %v600, 64
      %v618 = vpop.permute.xlu0 %617
      %619 = vrot.lane.b32.xlu0 %v601, 64
      %v620 = vpop.permute.xlu0 %619
      %621 = vrot.lane.b32.xlu0 %v602, 64
      %v622 = vpop.permute.xlu0 %621
      %623 = vrot.lane.b32.xlu0 %v603, 64
      %v624 = vpop.permute.xlu0 %623
      %v633 = vunpack.c.l.b16 %v605
      %v634 = vunpack.c.l.b16 %v606
      %v635 = vunpack.c.l.b16 %v607
      %v636 = vunpack.c.l.b16 %v608
      %v637 = vunpack.c.l.b16 %v609
      %v638 = vunpack.c.l.b16 %v610
      %v639 = vunpack.c.l.b16 %v611
      %v640 = vunpack.c.l.b16 %v612
      %v641 = vpack.c.b16 %v634, %v633
      %v642 = vpack.c.b16 %v636, %v635
      %v643 = vpack.c.b16 %v638, %v637
      %v644 = vpack.c.b16 %v640, %v639
      %v650 = vsel %vm264, %v618, 0
      %v653 = vsel %vm264, %v620, 0
      %v656 = vsel %vm264, %v622, 0
      %v659 = vsel %vm264, %v624, 0
      %661 = vmatprep.subr.bf16.mxu0 0
      %662 = vmatpush1.bf16.msra.mxu0 %v641
      %663 = vmatprep.subr.bf16.mxu0 0
      %664 = vmatpush1.bf16.msra.mxu0 %v642
      %665 = vmatprep.subr.bf16.mxu0 0
      %666 = vmatpush1.bf16.msra.mxu0 %v643
      %667 = vmatprep.subr.bf16.mxu0 0
      %668 = vmatpush1.bf16.msra.mxu0 %v644
      %669 = vmatprep.subr.bf16.mxu0 0
      %670 = vmatpush1.bf16.msra.mxu0 0
      %671 = vmatprep.subr.bf16.mxu0 0
      %672 = vmatpush1.bf16.msra.mxu0 0
      %673 = vmatprep.subr.bf16.mxu0 0
      %674 = vmatpush1.bf16.msra.mxu0 0
      %675 = vmatprep.subr.bf16.mxu0 0
      %676 = vmatpush1.bf16.msra.mxu0 0
      %677 = vmatprep.subr.bf16.mxu0 0
      %678 = vmatpush1.bf16.msra.mxu0 0
      %679 = vmatprep.subr.bf16.mxu0 0
      %680 = vmatpush1.bf16.msra.mxu0 0
      %681 = vmatprep.subr.bf16.mxu0 0
      %682 = vmatpush1.bf16.msra.mxu0 0
      %683 = vmatprep.subr.bf16.mxu0 0
      %684 = vmatpush1.bf16.msra.mxu0 0
      %685 = vmatprep.subr.bf16.mxu0 0
      %686 = vmatpush1.bf16.msra.mxu0 0
      %687 = vmatprep.subr.bf16.mxu0 0
      %688 = vmatpush1.bf16.msra.mxu0 0
      %689 = vmatprep.subr.bf16.mxu0 0
      %690 = vmatpush1.bf16.msra.mxu0 0
      %691 = vmatprep.subr.bf16.mxu0 0
      %692 = vmatpush1.bf16.msra.mxu0 0
      %693 = vmatprep.mubr.bf16.mxu0 0
      %694 = vmatmul.mubr.bf16.gmra.mrb[0].mxu0 %v650
      %v695 = vpop.f32.mrb[0].mxu0
      %v696 = vadd.f32 0.0, %v695
      %v697 = vpop.f32.mrb[0].mxu0
      %v698 = vpop.f32.mrb[0].mxu0
      %v699 = vadd.f32 0.0, %v698
      %v700 = vpop.f32.mrb[0].mxu0
      %701 = vmatprep.mubr.bf16.mxu0 0
      %702 = vmatmul.mubr.bf16.gmra.mrb[0].mxu0 %v653
      %v703 = vpop.f32.mrb[0].mxu0
      %v704 = vadd.f32 0.0, %v703
      %v705 = vpop.f32.mrb[0].mxu0
      %v706 = vpop.f32.mrb[0].mxu0
      %v707 = vadd.f32 0.0, %v706
      %v708 = vpop.f32.mrb[0].mxu0
      %709 = vmatprep.mubr.bf16.mxu0 0
      %710 = vmatmul.mubr.bf16.gmra.mrb[0].mxu0 %v656
      %v711 = vpop.f32.mrb[0].mxu0
      %v712 = vadd.f32 0.0, %v711
      %v713 = vpop.f32.mrb[0].mxu0
      %v714 = vpop.f32.mrb[0].mxu0
      %v715 = vadd.f32 0.0, %v714
      %v716 = vpop.f32.mrb[0].mxu0
      %717 = vmatprep.mubr.bf16.mxu0 0
      %718 = vmatmul.mubr.bf16.gmra.mrb[0].mxu0 %v659
      %v719 = vpop.f32.mrb[0].mxu0
      %v720 = vadd.f32 0.0, %v719
      %v721 = vpop.f32.mrb[0].mxu0
      %v722 = vpop.f32.mrb[0].mxu0
      %v723 = vadd.f32 0.0, %v722
      %v724 = vpop.f32.mrb[0].mxu0
      %725 = vdwg.mxu0
      %v734 = vunpack.c.l.b16 %v402
      %v735 = vunpack.c.l.b16 %v403
      %v736 = vunpack.c.l.b16 %v404
      %v737 = vunpack.c.l.b16 %v405
      %v738 = vunpack.c.l.b16 %v406
      %v739 = vunpack.c.l.b16 %v407
      %v740 = vunpack.c.l.b16 %v408
      %v741 = vunpack.c.l.b16 %v409
      %v742 = vpack.c.b16 %v735, %v734
      %v743 = vpack.c.b16 %v737, %v736
      %v744 = vpack.c.b16 %v739, %v738
      %v745 = vpack.c.b16 %v741, %v740
      %v751 = vsel %vm264, %v398, 0
      %v754 = vsel %vm264, %v399, 0
      %v757 = vsel %vm264, %v400, 0
      %v760 = vsel %vm264, %v401, 0
      %762 = vmatprep.subr.bf16.mxu0 0
      %763 = vmatpush1.bf16.msra.mxu0 %v742
      %764 = vmatprep.subr.bf16.mxu0 0
      %765 = vmatpush1.bf16.msra.mxu0 %v743
      %766 = vmatprep.subr.bf16.mxu0 0
      %767 = vmatpush1.bf16.msra.mxu0 %v744
      %768 = vmatprep.subr.bf16.mxu0 0
      %769 = vmatpush1.bf16.msra.mxu0 %v745
      %770 = vmatprep.subr.bf16.mxu0 0
      %771 = vmatpush1.bf16.msra.mxu0 0
      %772 = vmatprep.subr.bf16.mxu0 0
      %773 = vmatpush1.bf16.msra.mxu0 0
      %774 = vmatprep.subr.bf16.mxu0 0
      %775 = vmatpush1.bf16.msra.mxu0 0
      %776 = vmatprep.subr.bf16.mxu0 0
      %777 = vmatpush1.bf16.msra.mxu0 0
      %778 = vmatprep.subr.bf16.mxu0 0
      %779 = vmatpush1.bf16.msra.mxu0 0
      %780 = vmatprep.subr.bf16.mxu0 0
      %781 = vmatpush1.bf16.msra.mxu0 0
      %782 = vmatprep.subr.bf16.mxu0 0
      %783 = vmatpush1.bf16.msra.mxu0 0
      %784 = vmatprep.subr.bf16.mxu0 0
      %785 = vmatpush1.bf16.msra.mxu0 0
      %786 = vmatprep.subr.bf16.mxu0 0
      %787 = vmatpush1.bf16.msra.mxu0 0
      %788 = vmatprep.subr.bf16.mxu0 0
      %789 = vmatpush1.bf16.msra.mxu0 0
      %790 = vmatprep.subr.bf16.mxu0 0
      %791 = vmatpush1.bf16.msra.mxu0 0
      %792 = vmatprep.subr.bf16.mxu0 0
      %793 = vmatpush1.bf16.msra.mxu0 0
      %794 = vmatprep.mubr.bf16.mxu0 0
      %795 = vmatmul.mubr.bf16.gmra.mrb[0].mxu0 %v751
      %v796 = vpop.f32.mrb[0].mxu0
      %v797 = vadd.f32 %v696, %v796
      %v798 = vpop.f32.mrb[0].mxu0
      %v799 = vpop.f32.mrb[0].mxu0
      %v800 = vadd.f32 %v699, %v799
      %v801 = vpop.f32.mrb[0].mxu0
      %802 = vmatprep.mubr.bf16.mxu0 0
      %803 = vmatmul.mubr.bf16.gmra.mrb[0].mxu0 %v754
      %v804 = vpop.f32.mrb[0].mxu0
      %v805 = vadd.f32 %v704, %v804
      %v806 = vpop.f32.mrb[0].mxu0
      %v807 = vpop.f32.mrb[0].mxu0
      %v808 = vadd.f32 %v707, %v807
      %v809 = vpop.f32.mrb[0].mxu0
      %810 = vmatprep.mubr.bf16.mxu0 0
      %811 = vmatmul.mubr.bf16.gmra.mrb[0].mxu0 %v757
      %v812 = vpop.f32.mrb[0].mxu0
      %v813 = vadd.f32 %v712, %v812
      %v814 = vpop.f32.mrb[0].mxu0
      %v815 = vpop.f32.mrb[0].mxu0
      %v816 = vadd.f32 %v715, %v815
      %v817 = vpop.f32.mrb[0].mxu0
      %818 = vmatprep.mubr.bf16.mxu0 0
      %819 = vmatmul.mubr.bf16.gmra.mrb[0].mxu0 %v760
      %v820 = vpop.f32.mrb[0].mxu0
      %v821 = vadd.f32 %v720, %v820
      %v822 = vpop.f32.mrb[0].mxu0
      %v823 = vpop.f32.mrb[0].mxu0
      %v824 = vadd.f32 %v723, %v823
      %v825 = vpop.f32.mrb[0].mxu0
      %826 = vdwg.mxu0
      %v827 = vsel %vm264, %v247, 0.0
      %828 = vadd.xlane.f32.xlu0 %v827
      %v829 = vpop.xlane.xlu0 %828
      %v830 = vsel %vm264, %v249, 0.0
      %831 = vadd.xlane.f32.xlu0 %v830
      %v832 = vpop.xlane.xlu0 %831
      %v833 = vsel %vm264, %v251, 0.0
      %834 = vadd.xlane.f32.xlu0 %v833
      %v835 = vpop.xlane.xlu0 %834
      %v836 = vsel %vm264, %v253, 0.0
      %837 = vadd.xlane.f32.xlu0 %v836
      %v838 = vpop.xlane.xlu0 %837
      %v839 = vsel %vm264, %v255, 0.0
      %840 = vadd.xlane.f32.xlu0 %v839
      %v841 = vpop.xlane.xlu0 %840
      %v842 = vsel %vm264, %v257, 0.0
      %843 = vadd.xlane.f32.xlu0 %v842
      %v844 = vpop.xlane.xlu0 %843
      %v845 = vsel %vm264, %v259, 0.0
      %846 = vadd.xlane.f32.xlu0 %v845
      %v847 = vpop.xlane.xlu0 %846
      %v848 = vsel %vm264, %v261, 0.0
      %849 = vadd.xlane.f32.xlu0 %v848
      %v850 = vpop.xlane.xlu0 %849
      %v851 = vmul.f32 %v829, %v289
      %v852 = vmul.f32 %v832, %v289
      %v853 = vmul.f32 %v835, %v289
      %v854 = vmul.f32 %v838, %v289
      %v855 = vmul.f32 %v841, %v289
      %v856 = vmul.f32 %v844, %v289
      %v857 = vmul.f32 %v847, %v289
      %v858 = vmul.f32 %v850, %v289
      %v859 = vsub.f32 %v247, %v851
      %v860 = vsub.f32 %v249, %v852
      %v861 = vsub.f32 %v251, %v853
      %v862 = vsub.f32 %v253, %v854
      %v863 = vsub.f32 %v255, %v855
      %v864 = vsub.f32 %v257, %v856
      %v865 = vsub.f32 %v259, %v857
      %v866 = vsub.f32 %v261, %v858
      %v867 = vmul.f32 %v859, %v859
      %v868 = vmul.f32 %v860, %v860
      %v869 = vmul.f32 %v861, %v861
      %v870 = vmul.f32 %v862, %v862
      %v871 = vmul.f32 %v863, %v863
      %v872 = vmul.f32 %v864, %v864
      %v873 = vmul.f32 %v865, %v865
      %v874 = vmul.f32 %v866, %v866
      %v875 = vsel %vm264, %v867, 0.0
      %876 = vadd.xlane.f32.xlu0 %v875
      %v877 = vpop.xlane.xlu0 %876
      %v878 = vsel %vm264, %v868, 0.0
      %879 = vadd.xlane.f32.xlu0 %v878
      %v880 = vpop.xlane.xlu0 %879
      %v881 = vsel %vm264, %v869, 0.0
      %882 = vadd.xlane.f32.xlu0 %v881
      %v883 = vpop.xlane.xlu0 %882
      %v884 = vsel %vm264, %v870, 0.0
      %885 = vadd.xlane.f32.xlu0 %v884
      %v886 = vpop.xlane.xlu0 %885
      %v887 = vsel %vm264, %v871, 0.0
      %888 = vadd.xlane.f32.xlu0 %v887
      %v889 = vpop.xlane.xlu0 %888
      %v890 = vsel %vm264, %v872, 0.0
      %891 = vadd.xlane.f32.xlu0 %v890
      %v892 = vpop.xlane.xlu0 %891
      %v893 = vsel %vm264, %v873, 0.0
      %894 = vadd.xlane.f32.xlu0 %v893
      %v895 = vpop.xlane.xlu0 %894
      %v896 = vsel %vm264, %v874, 0.0
      %897 = vadd.xlane.f32.xlu0 %v896
      %v898 = vpop.xlane.xlu0 %897
      %v899 = vmul.f32 %v877, %v289
      %v900 = vmul.f32 %v880, %v289
      %v901 = vmul.f32 %v883, %v289
      %v902 = vmul.f32 %v886, %v289
      %v903 = vmul.f32 %v889, %v289
      %v904 = vmul.f32 %v892, %v289
      %v905 = vmul.f32 %v895, %v289
      %v906 = vmul.f32 %v898, %v289
      %v907 = vadd.f32 %v899, 1e-05
      %v908 = vadd.f32 %v900, 1e-05
      %v909 = vadd.f32 %v901, 1e-05
      %v910 = vadd.f32 %v902, 1e-05
      %v911 = vadd.f32 %v903, 1e-05
      %v912 = vadd.f32 %v904, 1e-05
      %v913 = vadd.f32 %v905, 1e-05
      %v914 = vadd.f32 %v906, 1e-05
      %v915 = vrsqrt.pop %v907
      %v916 = vrsqrt.pop %v908
      %v917 = vrsqrt.pop %v909
      %v918 = vrsqrt.pop %v910
      %v919 = vrsqrt.pop %v911
      %v920 = vrsqrt.pop %v912
      %v921 = vrsqrt.pop %v913
      %v922 = vrsqrt.pop %v914
      %v923 = vmul.f32 %v859, %v915
      %v924 = vmul.f32 %v860, %v916
      %v925 = vmul.f32 %v861, %v917
      %v926 = vmul.f32 %v862, %v918
      %v927 = vmul.f32 %v863, %v919
      %v928 = vmul.f32 %v864, %v920
      %v929 = vmul.f32 %v865, %v921
      %v930 = vmul.f32 %v866, %v922
      %v931 = vmul.f32 %v923, %v374
      %v932 = vmul.f32 %v924, %v374
      %v933 = vmul.f32 %v925, %v374
      %v934 = vmul.f32 %v926, %v374
      %v935 = vmul.f32 %v927, %v374
      %v936 = vmul.f32 %v928, %v374
      %v937 = vmul.f32 %v929, %v374
      %v938 = vmul.f32 %v930, %v374
      %v939 = vadd.f32 %v931, %v388
      %v940 = vadd.f32 %v932, %v388
      %v941 = vadd.f32 %v933, %v388
      %v942 = vadd.f32 %v934, %v388
      %v943 = vadd.f32 %v935, %v388
      %v944 = vadd.f32 %v936, %v388
      %v945 = vadd.f32 %v937, %v388
      %v946 = vadd.f32 %v938, %v388
      %v947 = vpack.c.bf16 %v940, %v939
      %v948 = vpack.c.bf16 %v942, %v941
      %v949 = vpack.c.bf16 %v944, %v943
      %v950 = vpack.c.bf16 %v946, %v945
      %s951 = scalar_lea.vmem %s3, 64
      %v952 = vld [vmem:[%s951] sm:$0xf]
      %v953 = vld [vmem:[%s951 + $0x4] sm:$0xf]
      %v954 = vld [vmem:[%s951 + $0x8] sm:$0xf]
      %v955 = vld [vmem:[%s951 + $0xc] sm:$0xf]
      %v956 = vld [vmem:[%s951 + $0x10] sm:$0xf]
      %v957 = vld [vmem:[%s951 + $0x14] sm:$0xf]
      %v958 = vld [vmem:[%s951 + $0x18] sm:$0xf]
      %v959 = vld [vmem:[%s951 + $0x1c] sm:$0xf]
      %v968 = vunpack.c.l.b16 %v952
      %v969 = vunpack.c.l.b16 %v953
      %v970 = vunpack.c.l.b16 %v954
      %v971 = vunpack.c.l.b16 %v955
      %v972 = vunpack.c.l.b16 %v956
      %v973 = vunpack.c.l.b16 %v957
      %v974 = vunpack.c.l.b16 %v958
      %v975 = vunpack.c.l.b16 %v959
      %v976 = vpack.c.b16 %v969, %v968
      %v977 = vpack.c.b16 %v971, %v970
      %v978 = vpack.c.b16 %v973, %v972
      %v979 = vpack.c.b16 %v975, %v974
      %v985 = vsel %vm264, %v947, 0
      %v988 = vsel %vm264, %v948, 0
      %v991 = vsel %vm264, %v949, 0
      %v994 = vsel %vm264, %v950, 0
      %996 = vmatprep.subr.bf16.mxu0 0
      %997 = vmatpush1.bf16.msra.mxu0 %v976
      %998 = vmatprep.subr.bf16.mxu0 0
      %999 = vmatpush1.bf16.msra.mxu0 %v977
      %1000 = vmatprep.subr.bf16.mxu0 0
      %1001 = vmatpush1.bf16.msra.mxu0 %v978
      %1002 = vmatprep.subr.bf16.mxu0 0
      %1003 = vmatpush1.bf16.msra.mxu0 %v979
      %1004 = vmatprep.subr.bf16.mxu0 0
      %1005 = vmatpush1.bf16.msra.mxu0 0
      %1006 = vmatprep.subr.bf16.mxu0 0
      %1007 = vmatpush1.bf16.msra.mxu0 0
      %1008 = vmatprep.subr.bf16.mxu0 0
      %1009 = vmatpush1.bf16.msra.mxu0 0
      %1010 = vmatprep.subr.bf16.mxu0 0
      %1011 = vmatpush1.bf16.msra.mxu0 0
      %1012 = vmatprep.subr.bf16.mxu0 0
      %1013 = vmatpush1.bf16.msra.mxu0 0
      %1014 = vmatprep.subr.bf16.mxu0 0
      %1015 = vmatpush1.bf16.msra.mxu0 0
      %1016 = vmatprep.subr.bf16.mxu0 0
      %1017 = vmatpush1.bf16.msra.mxu0 0
      %1018 = vmatprep.subr.bf16.mxu0 0
      %1019 = vmatpush1.bf16.msra.mxu0 0
      %1020 = vmatprep.subr.bf16.mxu0 0
      %1021 = vmatpush1.bf16.msra.mxu0 0
      %1022 = vmatprep.subr.bf16.mxu0 0
      %1023 = vmatpush1.bf16.msra.mxu0 0
      %1024 = vmatprep.subr.bf16.mxu0 0
      %1025 = vmatpush1.bf16.msra.mxu0 0
      %1026 = vmatprep.subr.bf16.mxu0 0
      %1027 = vmatpush1.bf16.msra.mxu0 0
      %1028 = vmatprep.mubr.bf16.mxu0 0
      %1029 = vmatmul.mubr.bf16.gmra.mrb[0].mxu0 %v985
      %v1030 = vpop.f32.mrb[0].mxu0
      %v1031 = vadd.f32 0.0, %v1030
      %v1032 = vpop.f32.mrb[0].mxu0
      %v1033 = vpop.f32.mrb[0].mxu0
      %v1034 = vadd.f32 0.0, %v1033
      %v1035 = vpop.f32.mrb[0].mxu0
      %1036 = vmatprep.mubr.bf16.mxu0 0
      %1037 = vmatmul.mubr.bf16.gmra.mrb[0].mxu0 %v988
      %v1038 = vpop.f32.mrb[0].mxu0
      %v1039 = vadd.f32 0.0, %v1038
      %v1040 = vpop.f32.mrb[0].mxu0
      %v1041 = vpop.f32.mrb[0].mxu0
      %v1042 = vadd.f32 0.0, %v1041
      %v1043 = vpop.f32.mrb[0].mxu0
      %1044 = vmatprep.mubr.bf16.mxu0 0
      %1045 = vmatmul.mubr.bf16.gmra.mrb[0].mxu0 %v991
      %v1046 = vpop.f32.mrb[0].mxu0
      %v1047 = vadd.f32 0.0, %v1046
      %v1048 = vpop.f32.mrb[0].mxu0
      %v1049 = vpop.f32.mrb[0].mxu0
      %v1050 = vadd.f32 0.0, %v1049
      %v1051 = vpop.f32.mrb[0].mxu0
      %1052 = vmatprep.mubr.bf16.mxu0 0
      %1053 = vmatmul.mubr.bf16.gmra.mrb[0].mxu0 %v994
      %v1054 = vpop.f32.mrb[0].mxu0
      %v1055 = vadd.f32 0.0, %v1054
      %v1056 = vpop.f32.mrb[0].mxu0
      %v1057 = vpop.f32.mrb[0].mxu0
      %v1058 = vadd.f32 0.0, %v1057
      %v1059 = vpop.f32.mrb[0].mxu0
      %1060 = vdwg.mxu0
      %v1061 = vadd.f32 %v797, %v1031
      %v1062 = vadd.f32 %v800, %v1034
      %v1063 = vadd.f32 %v805, %v1039
      %v1064 = vadd.f32 %v808, %v1042
      %v1065 = vadd.f32 %v813, %v1047
      %v1066 = vadd.f32 %v816, %v1050
      %v1067 = vadd.f32 %v821, %v1055
      %v1068 = vadd.f32 %v824, %v1058
      %1077 = vrot.lane.b32.xlu0 %v247, 64
      %v1078 = vpop.permute.xlu0 %1077
      %1079 = vrot.lane.b32.xlu0 %v249, 64
      %v1080 = vpop.permute.xlu0 %1079
      %1081 = vrot.lane.b32.xlu0 %v251, 64
      %v1082 = vpop.permute.xlu0 %1081
      %1083 = vrot.lane.b32.xlu0 %v253, 64
      %v1084 = vpop.permute.xlu0 %1083
      %1085 = vrot.lane.b32.xlu0 %v255, 64
      %v1086 = vpop.permute.xlu0 %1085
      %1087 = vrot.lane.b32.xlu0 %v257, 64
      %v1088 = vpop.permute.xlu0 %1087
      %1089 = vrot.lane.b32.xlu0 %v259, 64
      %v1090 = vpop.permute.xlu0 %1089
      %1091 = vrot.lane.b32.xlu0 %v261, 64
      %v1092 = vpop.permute.xlu0 %1091
      %v1101 = vsel %vm264, %v1078, 0.0
      %1102 = vadd.xlane.f32.xlu0 %v1101
      %v1103 = vpop.xlane.xlu0 %1102
      %v1104 = vsel %vm264, %v1080, 0.0
      %1105 = vadd.xlane.f32.xlu0 %v1104
      %v1106 = vpop.xlane.xlu0 %1105
      %v1107 = vsel %vm264, %v1082, 0.0
      %1108 = vadd.xlane.f32.xlu0 %v1107
      %v1109 = vpop.xlane.xlu0 %1108
      %v1110 = vsel %vm264, %v1084, 0.0
      %1111 = vadd.xlane.f32.xlu0 %v1110
      %v1112 = vpop.xlane.xlu0 %1111
      %v1113 = vsel %vm264, %v1086, 0.0
      %1114 = vadd.xlane.f32.xlu0 %v1113
      %v1115 = vpop.xlane.xlu0 %1114
      %v1116 = vsel %vm264, %v1088, 0.0
      %1117 = vadd.xlane.f32.xlu0 %v1116
      %v1118 = vpop.xlane.xlu0 %1117
      %v1119 = vsel %vm264, %v1090, 0.0
      %1120 = vadd.xlane.f32.xlu0 %v1119
      %v1121 = vpop.xlane.xlu0 %1120
      %v1122 = vsel %vm264, %v1092, 0.0
      %1123 = vadd.xlane.f32.xlu0 %v1122
      %v1124 = vpop.xlane.xlu0 %1123
      %v1125 = vmul.f32 %v1103, %v289
      %v1126 = vmul.f32 %v1106, %v289
      %v1127 = vmul.f32 %v1109, %v289
      %v1128 = vmul.f32 %v1112, %v289
      %v1129 = vmul.f32 %v1115, %v289
      %v1130 = vmul.f32 %v1118, %v289
      %v1131 = vmul.f32 %v1121, %v289
      %v1132 = vmul.f32 %v1124, %v289
      %v1133 = vsub.f32 %v247, %v1125
      %v1134 = vsub.f32 %v249, %v1126
      %v1135 = vsub.f32 %v251, %v1127
      %v1136 = vsub.f32 %v253, %v1128
      %v1137 = vsub.f32 %v255, %v1129
      %v1138 = vsub.f32 %v257, %v1130
      %v1139 = vsub.f32 %v259, %v1131
      %v1140 = vsub.f32 %v261, %v1132
      %v1141 = vmul.f32 %v1133, %v1133
      %v1142 = vmul.f32 %v1134, %v1134
      %v1143 = vmul.f32 %v1135, %v1135
      %v1144 = vmul.f32 %v1136, %v1136
      %v1145 = vmul.f32 %v1137, %v1137
      %v1146 = vmul.f32 %v1138, %v1138
      %v1147 = vmul.f32 %v1139, %v1139
      %v1148 = vmul.f32 %v1140, %v1140
      %1157 = vrot.lane.b32.xlu0 %v1141, 64
      %v1158 = vpop.permute.xlu0 %1157
      %1159 = vrot.lane.b32.xlu0 %v1142, 64
      %v1160 = vpop.permute.xlu0 %1159
      %1161 = vrot.lane.b32.xlu0 %v1143, 64
      %v1162 = vpop.permute.xlu0 %1161
      %1163 = vrot.lane.b32.xlu0 %v1144, 64
      %v1164 = vpop.permute.xlu0 %1163
      %1165 = vrot.lane.b32.xlu0 %v1145, 64
      %v1166 = vpop.permute.xlu0 %1165
      %1167 = vrot.lane.b32.xlu0 %v1146, 64
      %v1168 = vpop.permute.xlu0 %1167
      %1169 = vrot.lane.b32.xlu0 %v1147, 64
      %v1170 = vpop.permute.xlu0 %1169
      %1171 = vrot.lane.b32.xlu0 %v1148, 64
      %v1172 = vpop.permute.xlu0 %1171
      %v1181 = vsel %vm264, %v1158, 0.0
      %1182 = vadd.xlane.f32.xlu0 %v1181
      %v1183 = vpop.xlane.xlu0 %1182
      %v1184 = vsel %vm264, %v1160, 0.0
      %1185 = vadd.xlane.f32.xlu0 %v1184
      %v1186 = vpop.xlane.xlu0 %1185
      %v1187 = vsel %vm264, %v1162, 0.0
      %1188 = vadd.xlane.f32.xlu0 %v1187
      %v1189 = vpop.xlane.xlu0 %1188
      %v1190 = vsel %vm264, %v1164, 0.0
      %1191 = vadd.xlane.f32.xlu0 %v1190
      %v1192 = vpop.xlane.xlu0 %1191
      %v1193 = vsel %vm264, %v1166, 0.0
      %1194 = vadd.xlane.f32.xlu0 %v1193
      %v1195 = vpop.xlane.xlu0 %1194
      %v1196 = vsel %vm264, %v1168, 0.0
      %1197 = vadd.xlane.f32.xlu0 %v1196
      %v1198 = vpop.xlane.xlu0 %1197
      %v1199 = vsel %vm264, %v1170, 0.0
      %1200 = vadd.xlane.f32.xlu0 %v1199
      %v1201 = vpop.xlane.xlu0 %1200
      %v1202 = vsel %vm264, %v1172, 0.0
      %1203 = vadd.xlane.f32.xlu0 %v1202
      %v1204 = vpop.xlane.xlu0 %1203
      %v1205 = vmul.f32 %v1183, %v289
      %v1206 = vmul.f32 %v1186, %v289
      %v1207 = vmul.f32 %v1189, %v289
      %v1208 = vmul.f32 %v1192, %v289
      %v1209 = vmul.f32 %v1195, %v289
      %v1210 = vmul.f32 %v1198, %v289
      %v1211 = vmul.f32 %v1201, %v289
      %v1212 = vmul.f32 %v1204, %v289
      %v1213 = vadd.f32 %v1205, 1e-05
      %v1214 = vadd.f32 %v1206, 1e-05
      %v1215 = vadd.f32 %v1207, 1e-05
      %v1216 = vadd.f32 %v1208, 1e-05
      %v1217 = vadd.f32 %v1209, 1e-05
      %v1218 = vadd.f32 %v1210, 1e-05
      %v1219 = vadd.f32 %v1211, 1e-05
      %v1220 = vadd.f32 %v1212, 1e-05
      %v1221 = vrsqrt.pop %v1213
      %v1222 = vrsqrt.pop %v1214
      %v1223 = vrsqrt.pop %v1215
      %v1224 = vrsqrt.pop %v1216
      %v1225 = vrsqrt.pop %v1217
      %v1226 = vrsqrt.pop %v1218
      %v1227 = vrsqrt.pop %v1219
      %v1228 = vrsqrt.pop %v1220
      %v1229 = vmul.f32 %v1133, %v1221
      %v1230 = vmul.f32 %v1134, %v1222
      %v1231 = vmul.f32 %v1135, %v1223
      %v1232 = vmul.f32 %v1136, %v1224
      %v1233 = vmul.f32 %v1137, %v1225
      %v1234 = vmul.f32 %v1138, %v1226
      %v1235 = vmul.f32 %v1139, %v1227
      %v1236 = vmul.f32 %v1140, %v1228
      %v1237 = vmul.f32 %v1229, %v579
      %v1238 = vmul.f32 %v1230, %v579
      %v1239 = vmul.f32 %v1231, %v579
      %v1240 = vmul.f32 %v1232, %v579
      %v1241 = vmul.f32 %v1233, %v579
      %v1242 = vmul.f32 %v1234, %v579
      %v1243 = vmul.f32 %v1235, %v579
      %v1244 = vmul.f32 %v1236, %v579
      %v1245 = vadd.f32 %v1237, %v590
      %v1246 = vadd.f32 %v1238, %v590
      %v1247 = vadd.f32 %v1239, %v590
      %v1248 = vadd.f32 %v1240, %v590
      %v1249 = vadd.f32 %v1241, %v590
      %v1250 = vadd.f32 %v1242, %v590
      %v1251 = vadd.f32 %v1243, %v590
      %v1252 = vadd.f32 %v1244, %v590
      %v1253 = vpack.c.bf16 %v1246, %v1245
      %v1254 = vpack.c.bf16 %v1248, %v1247
      %v1255 = vpack.c.bf16 %v1250, %v1249
      %v1256 = vpack.c.bf16 %v1252, %v1251
      %s1257 = scalar_lea.vmem %s3, 96
      %v1258 = vld [vmem:[%s1257] sm:$0xf]
      %v1259 = vld [vmem:[%s1257 + $0x4] sm:$0xf]
      %v1260 = vld [vmem:[%s1257 + $0x8] sm:$0xf]
      %v1261 = vld [vmem:[%s1257 + $0xc] sm:$0xf]
      %v1262 = vld [vmem:[%s1257 + $0x10] sm:$0xf]
      %v1263 = vld [vmem:[%s1257 + $0x14] sm:$0xf]
      %v1264 = vld [vmem:[%s1257 + $0x18] sm:$0xf]
      %v1265 = vld [vmem:[%s1257 + $0x1c] sm:$0xf]
      %1270 = vrot.lane.b32.xlu0 %v1253, 64
      %v1271 = vpop.permute.xlu0 %1270
      %1272 = vrot.lane.b32.xlu0 %v1254, 64
      %v1273 = vpop.permute.xlu0 %1272
      %1274 = vrot.lane.b32.xlu0 %v1255, 64
      %v1275 = vpop.permute.xlu0 %1274
      %1276 = vrot.lane.b32.xlu0 %v1256, 64
      %v1277 = vpop.permute.xlu0 %1276
      %v1286 = vunpack.c.l.b16 %v1258
      %v1287 = vunpack.c.l.b16 %v1259
      %v1288 = vunpack.c.l.b16 %v1260
      %v1289 = vunpack.c.l.b16 %v1261
      %v1290 = vunpack.c.l.b16 %v1262
      %v1291 = vunpack.c.l.b16 %v1263
      %v1292 = vunpack.c.l.b16 %v1264
      %v1293 = vunpack.c.l.b16 %v1265
      %v1294 = vpack.c.b16 %v1287, %v1286
      %v1295 = vpack.c.b16 %v1289, %v1288
      %v1296 = vpack.c.b16 %v1291, %v1290
      %v1297 = vpack.c.b16 %v1293, %v1292
      %v1303 = vsel %vm264, %v1271, 0
      %v1306 = vsel %vm264, %v1273, 0
      %v1309 = vsel %vm264, %v1275, 0
      %v1312 = vsel %vm264, %v1277, 0
      %1314 = vmatprep.subr.bf16.mxu0 0
      %1315 = vmatpush1.bf16.msra.mxu0 %v1294
      %1316 = vmatprep.subr.bf16.mxu0 0
      %1317 = vmatpush1.bf16.msra.mxu0 %v1295
      %1318 = vmatprep.subr.bf16.mxu0 0
      %1319 = vmatpush1.bf16.msra.mxu0 %v1296
      %1320 = vmatprep.subr.bf16.mxu0 0
      %1321 = vmatpush1.bf16.msra.mxu0 %v1297
      %1322 = vmatprep.subr.bf16.mxu0 0
      %1323 = vmatpush1.bf16.msra.mxu0 0
      %1324 = vmatprep.subr.bf16.mxu0 0
      %1325 = vmatpush1.bf16.msra.mxu0 0
      %1326 = vmatprep.subr.bf16.mxu0 0
      %1327 = vmatpush1.bf16.msra.mxu0 0
      %1328 = vmatprep.subr.bf16.mxu0 0
      %1329 = vmatpush1.bf16.msra.mxu0 0
      %1330 = vmatprep.subr.bf16.mxu0 0
      %1331 = vmatpush1.bf16.msra.mxu0 0
      %1332 = vmatprep.subr.bf16.mxu0 0
      %1333 = vmatpush1.bf16.msra.mxu0 0
      %1334 = vmatprep.subr.bf16.mxu0 0
      %1335 = vmatpush1.bf16.msra.mxu0 0
      %1336 = vmatprep.subr.bf16.mxu0 0
      %1337 = vmatpush1.bf16.msra.mxu0 0
      %1338 = vmatprep.subr.bf16.mxu0 0
      %1339 = vmatpush1.bf16.msra.mxu0 0
      %1340 = vmatprep.subr.bf16.mxu0 0
      %1341 = vmatpush1.bf16.msra.mxu0 0
      %1342 = vmatprep.subr.bf16.mxu0 0
      %1343 = vmatpush1.bf16.msra.mxu0 0
      %1344 = vmatprep.subr.bf16.mxu0 0
      %1345 = vmatpush1.bf16.msra.mxu0 0
      %1346 = vmatprep.mubr.bf16.mxu0 0
      %1347 = vmatmul.mubr.bf16.gmra.mrb[0].mxu0 %v1303
      %v1348 = vpop.f32.mrb[0].mxu0
      %v1349 = vadd.f32 0.0, %v1348
      %v1350 = vpop.f32.mrb[0].mxu0
      %v1351 = vpop.f32.mrb[0].mxu0
      %v1352 = vadd.f32 0.0, %v1351
      %v1353 = vpop.f32.mrb[0].mxu0
      %1354 = vmatprep.mubr.bf16.mxu0 0
      %1355 = vmatmul.mubr.bf16.gmra.mrb[0].mxu0 %v1306
      %v1356 = vpop.f32.mrb[0].mxu0
      %v1357 = vadd.f32 0.0, %v1356
      %v1358 = vpop.f32.mrb[0].mxu0
      %v1359 = vpop.f32.mrb[0].mxu0
      %v1360 = vadd.f32 0.0, %v1359
      %v1361 = vpop.f32.mrb[0].mxu0
      %1362 = vmatprep.mubr.bf16.mxu0 0
      %1363 = vmatmul.mubr.bf16.gmra.mrb[0].mxu0 %v1309
      %v1364 = vpop.f32.mrb[0].mxu0
      %v1365 = vadd.f32 0.0, %v1364
      %v1366 = vpop.f32.mrb[0].mxu0
      %v1367 = vpop.f32.mrb[0].mxu0
      %v1368 = vadd.f32 0.0, %v1367
      %v1369 = vpop.f32.mrb[0].mxu0
      %1370 = vmatprep.mubr.bf16.mxu0 0
      %1371 = vmatmul.mubr.bf16.gmra.mrb[0].mxu0 %v1312
      %v1372 = vpop.f32.mrb[0].mxu0
      %v1373 = vadd.f32 0.0, %v1372
      %v1374 = vpop.f32.mrb[0].mxu0
      %v1375 = vpop.f32.mrb[0].mxu0
      %v1376 = vadd.f32 0.0, %v1375
      %v1377 = vpop.f32.mrb[0].mxu0
      %1378 = vdwg.mxu0
      %v1379 = vadd.f32 %v1061, %v1349
      %v1380 = vadd.f32 %v1062, %v1352
      %v1381 = vadd.f32 %v1063, %v1357
      %v1382 = vadd.f32 %v1064, %v1360
      %v1383 = vadd.f32 %v1065, %v1365
      %v1384 = vadd.f32 %v1066, %v1368
      %v1385 = vadd.f32 %v1067, %v1373
      %v1386 = vadd.f32 %v1068, %v1376
      %1387 = vxpose.xlu0.b32.start [1/16] %v1379, 128
      %1388 = vxpose.xlu0.b32.cont [2/16] %v1380, 128
      %1389 = vxpose.xlu0.b32.cont [3/16] %v1381, 128
      %1390 = vxpose.xlu0.b32.cont [4/16] %v1382, 128
      %1391 = vxpose.xlu0.b32.cont [5/16] %v1383, 128
      %1392 = vxpose.xlu0.b32.cont [6/16] %v1384, 128
      %1393 = vxpose.xlu0.b32.cont [7/16] %v1385, 128
      %1394 = vxpose.xlu0.b32.cont [8/16] %v1386, 128
      %1395 = vxpose.xlu0.b32.cont [9/16] 0.0, 128
      %1396 = vxpose.xlu0.b32.cont [10/16] 0.0, 128
      %1397 = vxpose.xlu0.b32.cont [11/16] 0.0, 128
      %1398 = vxpose.xlu0.b32.cont [12/16] 0.0, 128
      %1399 = vxpose.xlu0.b32.cont [13/16] 0.0, 128
      %1400 = vxpose.xlu0.b32.cont [14/16] 0.0, 128
      %1401 = vxpose.xlu0.b32.cont [15/16] 0.0, 128
      %1402 = vxpose.xlu0.b32.end [16/16] 0.0, 128
      %v1403 = vpop.trf.xlu0
      %v1404 = vpop.trf.xlu0
      %v1405 = vpop.trf.xlu0
      %v1406 = vpop.trf.xlu0
      %v1407 = vpop.trf.xlu0
      %v1408 = vpop.trf.xlu0
      %v1409 = vpop.trf.xlu0
      %v1410 = vpop.trf.xlu0
      %v1411 = vpop.trf.xlu0
      %v1412 = vpop.trf.xlu0
      %v1413 = vpop.trf.xlu0
      %v1414 = vpop.trf.xlu0
      %v1415 = vpop.trf.xlu0
      %v1416 = vpop.trf.xlu0
      %v1417 = vpop.trf.xlu0
      %v1418 = vpop.trf.xlu0
      %1419 = vst.msk [vmem:[%s236] sm:$0xff] %vm264, %v1403
      %1420 = vst.msk [vmem:[%s236 + $0x8] sm:$0xff] %vm264, %v1404
      %1421 = vst.msk [vmem:[%s236 + $0x10] sm:$0xff] %vm264, %v1405
      %1422 = vst.msk [vmem:[%s236 + $0x18] sm:$0xff] %vm264, %v1406
      %1423 = vst.msk [vmem:[%s236 + $0x20] sm:$0xff] %vm264, %v1407
      %1424 = vst.msk [vmem:[%s236 + $0x28] sm:$0xff] %vm264, %v1408
      %1425 = vst.msk [vmem:[%s236 + $0x30] sm:$0xff] %vm264, %v1409
      %1426 = vst.msk [vmem:[%s236 + $0x38] sm:$0xff] %vm264, %v1410
      %1427 = vst.msk [vmem:[%s236 + $0x40] sm:$0xff] %vm264, %v1411
      %1428 = vst.msk [vmem:[%s236 + $0x48] sm:$0xff] %vm264, %v1412
      %1429 = vst.msk [vmem:[%s236 + $0x50] sm:$0xff] %vm264, %v1413
      %1430 = vst.msk [vmem:[%s236 + $0x58] sm:$0xff] %vm264, %v1414
      %1431 = vst.msk [vmem:[%s236 + $0x60] sm:$0xff] %vm264, %v1415
      %1432 = vst.msk [vmem:[%s236 + $0x68] sm:$0xff] %vm264, %v1416
      %1433 = vst.msk [vmem:[%s236 + $0x70] sm:$0xff] %vm264, %v1417
      %1434 = vst.msk [vmem:[%s236 + $0x78] sm:$0xff] %vm264, %v1418
      %p1435 = scmp.lt.s32.totalorder %s19, 1
      %s1436 = scalar_select %p1435, %s19, 1
      %p1437 = scmp.lt.s32.totalorder %s20, 0
      %s1438 = scalar_select %p1437, %s20, 0
      %s1439 = smul.addr %s1436, 16
      %s1440 = sadd.s32 %s1438, %s1439
      %s1441 = smul.addr %s1440, 8
      %s1442 = scalar_lea.vmem %s4, %s1441
      // Predicated region
      $region37: #{patch_merging.1} parent=35 // pred_check
        %p1443 = pneg %p138
      $region38: #{patch_merging.1} parent=35 // pred_check_branch
        %1445 = sbr.rel (%p1443) target = $region40
      $region39: #{patch_merging.1} parent=35 // pred_region
        _
      $region40: #{patch_merging.1} parent=35 // pred_fallthru
        _
    $region36: #{patch_merging.1} parent=5 // pred_fallthru
      _
    %p1446 = scmp.le.s32.totalorder 2, %s10
    // Predicated region
    $region41: #{patch_merging.1} parent=5 // pred_check
      %p1447 = pneg %p1446
    $region42: #{patch_merging.1} parent=5 // pred_check_branch
      %1449 = sbr.rel (%p1447) target = $region44
    $region43: #{patch_merging.1} parent=5 // pred_region
      %s1450 = ssub.s32 %s10, 2
      // Predicated region
      $region45: #{patch_merging.1} parent=43 // pred_check
        %p1451 = pneg %p144
      $region46: #{patch_merging.1} parent=43 // pred_check_branch
        %1453 = sbr.rel (%p1451) target = $region48
      $region47: #{patch_merging.1} parent=43 // pred_region
        %p1454 = scmp.lt.s32.totalorder %s21, 1
        %s1455 = scalar_select %p1454, %s21, 1
        %p1456 = scmp.lt.s32.totalorder %s22, 0
        %s1457 = scalar_select %p1456, %s22, 0
        %s1458 = smul.addr %s1455, 16
        %s1459 = sadd.s32 %s1457, %s1458
        %s1460 = smul.addr %s1459, 8
        %s1461 = scalar_lea.vmem %s4, %s1460
      $region48: #{patch_merging.1} parent=43 // pred_fallthru
        _
    $region44: #{patch_merging.1} parent=5 // pred_fallthru
      _
  $region6: #{patch_merging.1} parent=0 // loop_footer
    %s14 = sadd.s32 1, %s10
  $region7: #{patch_merging.1} parent=0 // loop_footer_branch
    %9 = sbr.rel target = $region3
  $region8: #{patch_merging.1} parent=0 // loop_exit
    _

</llo_original>
